<compile_context>
chip_gen: v7x
topology: tpu7x:2x2x1
jax: 0.10.0
libtpu: 0.0.40
codegen_flags: <defaults>
</compile_context>

<pallas_src>
import functools
import math

import jax
import jax.numpy as jnp
from jax.experimental import pallas as pl
from jax.experimental.pallas import tpu as pltpu

D_MODEL = 32
NHEAD = 4
HEAD_DIM = D_MODEL // NHEAD
DIM_FF = 4 * D_MODEL
EPS = 1e-5


# ----------------------------- in-kernel helpers -----------------------------

def _layernorm(x, g, b):
    # PyTorch LayerNorm: biased variance over the last dim.
    mu = jnp.mean(x, axis=-1, keepdims=True)
    var = jnp.mean((x - mu) * (x - mu), axis=-1, keepdims=True)
    return (x - mu) * jax.lax.rsqrt(var + EPS) * g + b


def _erf(z):
    # Abramowitz & Stegun 7.1.26 rational approximation (|err| < 1.5e-7, i.e.
    # f32 precision).  Used instead of lax.erf (no guaranteed Mosaic lowering).
    a1, a2, a3, a4, a5 = 0.254829592, -0.284496736, 1.421413741, -1.453152027, 1.061405429
    p = 0.3275911
    az = jnp.abs(z)
    t = 1.0 / (1.0 + p * az)
    poly = ((((a5 * t + a4) * t + a3) * t + a2) * t + a1) * t
    e = 1.0 - poly * jnp.exp(-az * az)
    return jnp.where(z >= 0, e, -e)


def _gelu(x):
    # exact (erf-based) GELU, matching nn.GELU() default (approximate='none')
    return 0.5 * x * (1.0 + _erf(x * 0.7071067811865476))


# --------------------------------- kernel ------------------------------------

def _block_kernel(B, S,
                  x_ref,
                  wqkv_ref, bqkv_ref,
                  wo_ref, bo_ref,
                  g1_ref, be1_ref, g2_ref, be2_ref,
                  g3_ref, be3_ref, g4_ref, be4_ref,
                  w1_ref, c1_ref, w2_ref, c2_ref,
                  out_ref):
    E = D_MODEL
    BS = B * S
    x = x_ref[...]                                   # (B*S, E), rows = b*S + s

    # Hoist every parameter load: read each ref exactly once.
    wqkv, bqkv = wqkv_ref[...], bqkv_ref[...]
    wo, bo = wo_ref[...], bo_ref[...]
    g1, be1 = g1_ref[...], be1_ref[...]
    g2, be2 = g2_ref[...], be2_ref[...]
    g3, be3 = g3_ref[...], be3_ref[...]
    g4, be4 = g4_ref[...], be4_ref[...]
    w1, c1 = w1_ref[...], c1_ref[...]
    w2, c2 = w2_ref[...], c2_ref[...]

    # ------------- self-attention block: norm1 -> MHA -> norm2 --------------
    xn = _layernorm(x, g1, be1)
    # Fused QKV projection: one (B*S, E) x (E, 3E) MXU push.  The softmax
    # scale is already folded into the q columns (weight + bias) host-side.
    qkv = jnp.dot(xn, wqkv, preferred_element_type=jnp.float32) + bqkv   # (BS, 3E)
    # Split the leading sublane dim only (S == 8 keeps it tile-aligned).
    qkv3 = qkv.reshape(B, S, 3 * E)                                      # (B, S, 3E)

    ctx_heads = []
    for h in range(NHEAD):                           # 4 unrolled head iterations
        lo = h * HEAD_DIM
        qh = qkv3[:, :, lo:lo + HEAD_DIM]                        # (B, S, HD)
        kh = qkv3[:, :, E + lo:E + lo + HEAD_DIM]
        vh = qkv3[:, :, 2 * E + lo:2 * E + lo + HEAD_DIM]
        # Batched over the batch dim: one dot_general per head instead of B.
        s = jnp.einsum('bqd,bkd->bqk', qh, kh,
                       preferred_element_type=jnp.float32)       # (B, S, S)
        s = s - jnp.max(s, axis=-1, keepdims=True)
        p = jnp.exp(s)
        p = p / jnp.sum(p, axis=-1, keepdims=True)   # exact divide (parity)
        ctx_heads.append(jnp.einsum('bqk,bkd->bqd', p, vh,
                                    preferred_element_type=jnp.float32))
    ctx = jnp.concatenate(ctx_heads, axis=-1).reshape(BS, E)     # (B*S, E)

    attn = jnp.dot(ctx, wo, preferred_element_type=jnp.float32) + bo
    x1 = x + _layernorm(attn, g2, be2)               # first residual

    # --------------------------- feed-forward block --------------------------
    # NOTE: the reference applies norm3 in forward() AND again inside
    # _ff_block, i.e. twice in a row; reproduced faithfully here.
    h3 = _layernorm(_layernorm(x1, g3, be3), g3, be3)
    f = _gelu(jnp.dot(h3, w1, preferred_element_type=jnp.float32) + c1)  # (BS, FF)
    f = _layernorm(f, g4, be4)
    y = x1 + jnp.dot(f, w2, preferred_element_type=jnp.float32) + c2     # (BS, E)

    # ----------------------------- store ------------------------------------
    if out_ref.shape[1] == E:
        # Fallback: plain (B*S, E) store.
        out_ref[...] = y.astype(out_ref.dtype)
    else:
        # Lane-dense (rows, 128) store: pack n_blk sublane slabs side-by-side
        # along lanes (cheap lane concat; wrapper inverts the packing).
        n_blk = out_ref.shape[1] // E
        row_blk = BS // n_blk
        packed = jnp.concatenate(
            [y[k * row_blk:(k + 1) * row_blk, :] for k in range(n_blk)], axis=1)
        out_ref[...] = packed.astype(out_ref.dtype)


# --------------------------------- wrapper ------------------------------------

def init_params(key, d_model=D_MODEL, dim_ff=DIM_FF):
    """Deterministic synthetic parameters matching the module's shapes."""
    ks = jax.random.split(key, 8)
    s = 0.05
    params = {
        "in_proj_w": jax.random.normal(ks[0], (3 * d_model, d_model), jnp.float32) * s,
        "in_proj_b": jax.random.normal(ks[1], (3 * d_model,), jnp.float32) * s,
        "out_proj_w": jax.random.normal(ks[2], (d_model, d_model), jnp.float32) * s,
        "out_proj_b": jax.random.normal(ks[3], (d_model,), jnp.float32) * s,
        "w1": jax.random.normal(ks[4], (dim_ff, d_model), jnp.float32) * s,
        "b1": jax.random.normal(ks[5], (dim_ff,), jnp.float32) * s,
        "w2": jax.random.normal(ks[6], (d_model, dim_ff), jnp.float32) * s,
        "b2": jax.random.normal(ks[7], (d_model,), jnp.float32) * s,
    }
    # LayerNorm affine params (PyTorch default init: gamma=1, beta=0)
    for name, dim in (("norm1", d_model), ("norm2", d_model),
                      ("norm3", d_model), ("norm4", dim_ff)):
        params[f"{name}_g"] = jnp.ones((dim,), jnp.float32)
        params[f"{name}_b"] = jnp.zeros((dim,), jnp.float32)
    return params


def prepare_params(params):
    """One-time host-side parameter prep:
       * fold 1/sqrt(head_dim) into the q rows of the packed QKV projection
         (weight AND bias — PyTorch scales q after the bias add, so folding
         both is exactly equivalent),
       * transpose weights to (in, out) layout for x @ W,
       * lift 1-D params to (1, N) TPU-friendly rows."""
    scale = 1.0 / math.sqrt(HEAD_DIM)
    fold = jnp.concatenate([jnp.full((D_MODEL,), scale, jnp.float32),
                            jnp.ones((2 * D_MODEL,), jnp.float32)])
    wqkv_t = (params["in_proj_w"] * fold[:, None]).T      # (E, 3E)
    bqkv = (params["in_proj_b"] * fold).reshape(1, -1)    # (1, 3E)

    def row(v):
        return v.reshape(1, -1)

    return (
        wqkv_t, bqkv,
        params["out_proj_w"].T, row(params["out_proj_b"]),
        row(params["norm1_g"]), row(params["norm1_b"]),
        row(params["norm2_g"]), row(params["norm2_b"]),
        row(params["norm3_g"]), row(params["norm3_b"]),
        row(params["norm4_g"]), row(params["norm4_b"]),
        params["w1"].T, row(params["b1"]),
        params["w2"].T, row(params["b2"]),
    )


def transformer_block(src, prep):
    """src: (S, B, E) float32, matching nn.MultiheadAttention batch_first=False."""
    S, B, E = src.shape
    assert E == D_MODEL
    BS = B * S
    assert S % 8 == 0, "per-batch row group must stay sublane-tile aligned"

    # Batch-major 2-D slab (rows = b*S + s): a ~2 KiB wrapper-side XLA
    # transpose/reshape, overlapped and free relative to in-kernel gathers.
    x2d = src.transpose(1, 0, 2).reshape(BS, E)

    # Lane-dense output layout when it tiles cleanly into 128-lane rows.
    lane_dense = (E % 128 != 0) and (128 % E == 0) and (BS % (128 // E) == 0)
    if lane_dense:
        n_blk = 128 // E
        row_blk = BS // n_blk
        out_shape2d = (row_blk, 128)
    else:
        out_shape2d = (BS, E)

    ops = (x2d,) + tuple(prep)
    in_specs = [pl.BlockSpec(op.shape, lambda i: (0, 0)) for op in ops]

    kernel = functools.partial(_block_kernel, B, S)

    # Single grid step: the whole (B*S, E) problem plus all weights is ~100 KB,
    # far under VMEM on every TPU generation, so the per-step pipeline overhead
    # is paid exactly once and every matmul runs over all B*S rows.
    # TODO(synk): for large B, tile rows (multiples of 8) over a grid axis marked
    # "parallel" (shards across v7x's 2 TensorCores), budget the double-buffered
    # tiles against v7x's 64 MiB VMEM (vs 128 MiB on v5e/v6e), set
    # vmem_limit_bytes explicitly, and feed bf16 operands once M >= 256 rows.
    out = pl.pallas_call(
        kernel,
        out_shape=jax.ShapeDtypeStruct(out_shape2d, src.dtype),
        grid=(1,),
        in_specs=in_specs,
        out_specs=pl.BlockSpec(out_shape2d, lambda i: (0, 0)),
        compiler_params=pltpu.CompilerParams(dimension_semantics=("arbitrary",)),
    )(*ops)

    # Invert the lane-dense packing (free host-side reshapes/transposes).
    if lane_dense:
        y2d = out.reshape(row_blk, n_blk, E).transpose(1, 0, 2).reshape(BS, E)
    else:
        y2d = out
    return y2d.reshape(B, S, E).transpose(1, 0, 2)


if __name__ == "__main__":
    key = jax.random.PRNGKey(0)
    k_src, k_par = jax.random.split(key)

    S, B = 8, 2
    src = jax.random.normal(k_src, (S, B, D_MODEL), jnp.float32)
    params = init_params(k_par)
    prep = prepare_params(params)        # one-time host-side fold / transposes

    out = transformer_block(src, prep)
    out = jax.block_until_ready(out)
    assert out.shape == (S, B, D_MODEL) and out.dtype == jnp.float32
    assert bool(jnp.all(jnp.isfinite(out)))
    print("KERNEL_OK")
</pallas_src>

<mosaic_0001>
module attributes {stable_mosaic.version = 11 : i64} {
  func.func @_block_kernel(%arg0: i32, %arg1: memref<16x32xf32, #tpu.memory_space<vmem>>, %arg2: memref<32x96xf32, #tpu.memory_space<vmem>>, %arg3: memref<1x96xf32, #tpu.memory_space<vmem>>, %arg4: memref<32x32xf32, #tpu.memory_space<vmem>>, %arg5: memref<1x32xf32, #tpu.memory_space<vmem>>, %arg6: memref<1x32xf32, #tpu.memory_space<vmem>>, %arg7: memref<1x32xf32, #tpu.memory_space<vmem>>, %arg8: memref<1x32xf32, #tpu.memory_space<vmem>>, %arg9: memref<1x32xf32, #tpu.memory_space<vmem>>, %arg10: memref<1x32xf32, #tpu.memory_space<vmem>>, %arg11: memref<1x32xf32, #tpu.memory_space<vmem>>, %arg12: memref<1x128xf32, #tpu.memory_space<vmem>>, %arg13: memref<1x128xf32, #tpu.memory_space<vmem>>, %arg14: memref<32x128xf32, #tpu.memory_space<vmem>>, %arg15: memref<1x128xf32, #tpu.memory_space<vmem>>, %arg16: memref<128x32xf32, #tpu.memory_space<vmem>>, %arg17: memref<1x32xf32, #tpu.memory_space<vmem>>, %arg18: memref<4x128xf32, #tpu.memory_space<vmem>>) attributes {dimension_semantics = [#tpu.dimension_semantics<arbitrary>], iteration_bounds = array<i64: 1>, scalar_prefetch = 0 : i64, scratch_operands = 0 : i64, tpu.core_type = #tpu.core_type<tc>, window_params = [{pipeline_mode = #tpu.pipeline_mode<synchronous>, transform_indices = @transform_0, window_bounds = array<i64: 16, 32>}, {pipeline_mode = #tpu.pipeline_mode<synchronous>, transform_indices = @transform_1, window_bounds = array<i64: 32, 96>}, {pipeline_mode = #tpu.pipeline_mode<synchronous>, transform_indices = @transform_2, window_bounds = array<i64: 1, 96>}, {pipeline_mode = #tpu.pipeline_mode<synchronous>, transform_indices = @transform_3, window_bounds = array<i64: 32, 32>}, {pipeline_mode = #tpu.pipeline_mode<synchronous>, transform_indices = @transform_4, window_bounds = array<i64: 1, 32>}, {pipeline_mode = #tpu.pipeline_mode<synchronous>, transform_indices = @transform_5, window_bounds = array<i64: 1, 32>}, {pipeline_mode = #tpu.pipeline_mode<synchronous>, transform_indices = @transform_6, window_bounds = array<i64: 1, 32>}, {pipeline_mode = #tpu.pipeline_mode<synchronous>, transform_indices = @transform_7, window_bounds = array<i64: 1, 32>}, {pipeline_mode = #tpu.pipeline_mode<synchronous>, transform_indices = @transform_8, window_bounds = array<i64: 1, 32>}, {pipeline_mode = #tpu.pipeline_mode<synchronous>, transform_indices = @transform_9, window_bounds = array<i64: 1, 32>}, {pipeline_mode = #tpu.pipeline_mode<synchronous>, transform_indices = @transform_10, window_bounds = array<i64: 1, 32>}, {pipeline_mode = #tpu.pipeline_mode<synchronous>, transform_indices = @transform_11, window_bounds = array<i64: 1, 128>}, {pipeline_mode = #tpu.pipeline_mode<synchronous>, transform_indices = @transform_12, window_bounds = array<i64: 1, 128>}, {pipeline_mode = #tpu.pipeline_mode<synchronous>, transform_indices = @transform_13, window_bounds = array<i64: 32, 128>}, {pipeline_mode = #tpu.pipeline_mode<synchronous>, transform_indices = @transform_14, window_bounds = array<i64: 1, 128>}, {pipeline_mode = #tpu.pipeline_mode<synchronous>, transform_indices = @transform_15, window_bounds = array<i64: 128, 32>}, {pipeline_mode = #tpu.pipeline_mode<synchronous>, transform_indices = @transform_16, window_bounds = array<i64: 1, 32>}, {pipeline_mode = #tpu.pipeline_mode<synchronous>, transform_indices = @transform_17, window_bounds = array<i64: 4, 128>}]} {
    %c0 = arith.constant 0 : index
    %c0_0 = arith.constant 0 : index
    %0 = vector.load %arg1[%c0, %c0_0] : memref<16x32xf32, #tpu.memory_space<vmem>>, vector<16x32xf32>
    %c0_1 = arith.constant 0 : index
    %c0_2 = arith.constant 0 : index
    %1 = vector.load %arg2[%c0_1, %c0_2] : memref<32x96xf32, #tpu.memory_space<vmem>>, vector<32x96xf32>
    %c0_3 = arith.constant 0 : index
    %c0_4 = arith.constant 0 : index
    %2 = vector.load %arg3[%c0_3, %c0_4] : memref<1x96xf32, #tpu.memory_space<vmem>>, vector<1x96xf32>
    %c0_5 = arith.constant 0 : index
    %c0_6 = arith.constant 0 : index
    %3 = vector.load %arg4[%c0_5, %c0_6] : memref<32x32xf32, #tpu.memory_space<vmem>>, vector<32x32xf32>
    %c0_7 = arith.constant 0 : index
    %c0_8 = arith.constant 0 : index
    %4 = vector.load %arg5[%c0_7, %c0_8] : memref<1x32xf32, #tpu.memory_space<vmem>>, vector<1x32xf32>
    %c0_9 = arith.constant 0 : index
    %c0_10 = arith.constant 0 : index
    %5 = vector.load %arg6[%c0_9, %c0_10] : memref<1x32xf32, #tpu.memory_space<vmem>>, vector<1x32xf32>
    %c0_11 = arith.constant 0 : index
    %c0_12 = arith.constant 0 : index
    %6 = vector.load %arg7[%c0_11, %c0_12] : memref<1x32xf32, #tpu.memory_space<vmem>>, vector<1x32xf32>
    %c0_13 = arith.constant 0 : index
    %c0_14 = arith.constant 0 : index
    %7 = vector.load %arg8[%c0_13, %c0_14] : memref<1x32xf32, #tpu.memory_space<vmem>>, vector<1x32xf32>
    %c0_15 = arith.constant 0 : index
    %c0_16 = arith.constant 0 : index
    %8 = vector.load %arg9[%c0_15, %c0_16] : memref<1x32xf32, #tpu.memory_space<vmem>>, vector<1x32xf32>
    %c0_17 = arith.constant 0 : index
    %c0_18 = arith.constant 0 : index
    %9 = vector.load %arg10[%c0_17, %c0_18] : memref<1x32xf32, #tpu.memory_space<vmem>>, vector<1x32xf32>
    %c0_19 = arith.constant 0 : index
    %c0_20 = arith.constant 0 : index
    %10 = vector.load %arg11[%c0_19, %c0_20] : memref<1x32xf32, #tpu.memory_space<vmem>>, vector<1x32xf32>
    %c0_21 = arith.constant 0 : index
    %c0_22 = arith.constant 0 : index
    %11 = vector.load %arg12[%c0_21, %c0_22] : memref<1x128xf32, #tpu.memory_space<vmem>>, vector<1x128xf32>
    %c0_23 = arith.constant 0 : index
    %c0_24 = arith.constant 0 : index
    %12 = vector.load %arg13[%c0_23, %c0_24] : memref<1x128xf32, #tpu.memory_space<vmem>>, vector<1x128xf32>
    %c0_25 = arith.constant 0 : index
    %c0_26 = arith.constant 0 : index
    %13 = vector.load %arg14[%c0_25, %c0_26] : memref<32x128xf32, #tpu.memory_space<vmem>>, vector<32x128xf32>
    %c0_27 = arith.constant 0 : index
    %c0_28 = arith.constant 0 : index
    %14 = vector.load %arg15[%c0_27, %c0_28] : memref<1x128xf32, #tpu.memory_space<vmem>>, vector<1x128xf32>
    %c0_29 = arith.constant 0 : index
    %c0_30 = arith.constant 0 : index
    %15 = vector.load %arg16[%c0_29, %c0_30] : memref<128x32xf32, #tpu.memory_space<vmem>>, vector<128x32xf32>
    %c0_31 = arith.constant 0 : index
    %c0_32 = arith.constant 0 : index
    %16 = vector.load %arg17[%c0_31, %c0_32] : memref<1x32xf32, #tpu.memory_space<vmem>>, vector<1x32xf32>
    %cst = arith.constant dense<0.000000e+00> : vector<16xf32>
    %17 = vector.multi_reduction <add>, %0, %cst [1] : vector<16x32xf32> to vector<16xf32>
    %18 = vector.shape_cast %17 : vector<16xf32> to vector<16x1xf32>
    %cst_33 = arith.constant 3.200000e+01 : f32
    %19 = vector.broadcast %cst_33 : f32 to vector<16x1xf32>
    %20 = arith.divf %18, %19 : vector<16x1xf32>
    %21 = vector.broadcast %20 : vector<16x1xf32> to vector<16x32xf32>
    %22 = arith.subf %0, %21 : vector<16x32xf32>
    %23 = vector.broadcast %20 : vector<16x1xf32> to vector<16x32xf32>
    %24 = arith.subf %0, %23 : vector<16x32xf32>
    %25 = arith.mulf %22, %24 : vector<16x32xf32>
    %cst_34 = arith.constant dense<0.000000e+00> : vector<16xf32>
    %26 = vector.multi_reduction <add>, %25, %cst_34 [1] : vector<16x32xf32> to vector<16xf32>
    %27 = vector.shape_cast %26 : vector<16xf32> to vector<16x1xf32>
    %cst_35 = arith.constant 3.200000e+01 : f32
    %28 = vector.broadcast %cst_35 : f32 to vector<16x1xf32>
    %29 = arith.divf %27, %28 : vector<16x1xf32>
    %30 = vector.broadcast %20 : vector<16x1xf32> to vector<16x32xf32>
    %31 = arith.subf %0, %30 : vector<16x32xf32>
    %cst_36 = arith.constant 9.99999974E-6 : f32
    %32 = vector.broadcast %cst_36 : f32 to vector<16x1xf32>
    %33 = arith.addf %29, %32 : vector<16x1xf32>
    %34 = math.rsqrt %33 : vector<16x1xf32>
    %35 = vector.broadcast %34 : vector<16x1xf32> to vector<16x32xf32>
    %36 = arith.mulf %31, %35 : vector<16x32xf32>
    %37 = vector.broadcast %5 : vector<1x32xf32> to vector<16x32xf32>
    %38 = arith.mulf %36, %37 : vector<16x32xf32>
    %39 = vector.broadcast %6 : vector<1x32xf32> to vector<16x32xf32>
    %40 = arith.addf %38, %39 : vector<16x32xf32>
    %cst_37 = arith.constant dense<0.000000e+00> : vector<16x96xf32>
    %41 = tpu.matmul %40, %1, %cst_37 {dimension_numbers = #tpu.dot_dimension_numbers<[1], [0], [0], [1], [0, 0, 1, 1], [], []>} : vector<16x32xf32>, vector<32x96xf32>, vector<16x96xf32> -> vector<16x96xf32>
    %42 = vector.broadcast %2 : vector<1x96xf32> to vector<16x96xf32>
    %43 = arith.addf %41, %42 : vector<16x96xf32>
    %44 = vector.shape_cast %43 : vector<16x96xf32> to vector<2x8x96xf32>
    %45 = vector.extract_strided_slice %44 {offsets = [0, 0, 0], sizes = [2, 8, 8], strides = [1, 1, 1]} : vector<2x8x96xf32> to vector<2x8x8xf32>
    %46 = vector.extract_strided_slice %44 {offsets = [0, 0, 32], sizes = [2, 8, 8], strides = [1, 1, 1]} : vector<2x8x96xf32> to vector<2x8x8xf32>
    %47 = vector.extract_strided_slice %44 {offsets = [0, 0, 64], sizes = [2, 8, 8], strides = [1, 1, 1]} : vector<2x8x96xf32> to vector<2x8x8xf32>
    "tpu.trace_start"() <{level = 10 : i32, message = "bqd,bkd->bqk"}> : () -> ()
    %cst_38 = arith.constant dense<0.000000e+00> : vector<2x8x8xf32>
    %48 = tpu.matmul %45, %46, %cst_38 {dimension_numbers = #tpu.dot_dimension_numbers<[2], [2], [1], [1], [0, 0, 0, 1, 1, 1], [0], [0]>} : vector<2x8x8xf32>, vector<2x8x8xf32>, vector<2x8x8xf32> -> vector<2x8x8xf32>
    "tpu.trace_stop"() : () -> ()
    %cst_39 = arith.constant dense<0xFF800000> : vector<2x8xf32>
    %49 = vector.multi_reduction <maximumf>, %48, %cst_39 [2] : vector<2x8x8xf32> to vector<2x8xf32>
    %50 = vector.shape_cast %49 : vector<2x8xf32> to vector<2x8x1xf32>
    %51 = vector.broadcast %50 : vector<2x8x1xf32> to vector<2x8x8xf32>
    %52 = arith.subf %48, %51 : vector<2x8x8xf32>
    %53 = math.exp %52 : vector<2x8x8xf32>
    %cst_40 = arith.constant dense<0.000000e+00> : vector<2x8xf32>
    %54 = vector.multi_reduction <add>, %53, %cst_40 [2] : vector<2x8x8xf32> to vector<2x8xf32>
    %55 = vector.shape_cast %54 : vector<2x8xf32> to vector<2x8x1xf32>
    %56 = vector.broadcast %55 : vector<2x8x1xf32> to vector<2x8x8xf32>
    %57 = arith.divf %53, %56 : vector<2x8x8xf32>
    "tpu.trace_start"() <{level = 10 : i32, message = "bqk,bkd->bqd"}> : () -> ()
    %cst_41 = arith.constant dense<0.000000e+00> : vector<2x8x8xf32>
    %58 = tpu.matmul %57, %47, %cst_41 {dimension_numbers = #tpu.dot_dimension_numbers<[2], [1], [1], [2], [0, 0, 0, 1, 1, 2], [0], [0]>} : vector<2x8x8xf32>, vector<2x8x8xf32>, vector<2x8x8xf32> -> vector<2x8x8xf32>
    "tpu.trace_stop"() : () -> ()
    %59 = vector.extract_strided_slice %44 {offsets = [0, 0, 8], sizes = [2, 8, 8], strides = [1, 1, 1]} : vector<2x8x96xf32> to vector<2x8x8xf32>
    %60 = vector.extract_strided_slice %44 {offsets = [0, 0, 40], sizes = [2, 8, 8], strides = [1, 1, 1]} : vector<2x8x96xf32> to vector<2x8x8xf32>
    %61 = vector.extract_strided_slice %44 {offsets = [0, 0, 72], sizes = [2, 8, 8], strides = [1, 1, 1]} : vector<2x8x96xf32> to vector<2x8x8xf32>
    "tpu.trace_start"() <{level = 10 : i32, message = "bqd,bkd->bqk"}> : () -> ()
    %cst_42 = arith.constant dense<0.000000e+00> : vector<2x8x8xf32>
    %62 = tpu.matmul %59, %60, %cst_42 {dimension_numbers = #tpu.dot_dimension_numbers<[2], [2], [1], [1], [0, 0, 0, 1, 1, 1], [0], [0]>} : vector<2x8x8xf32>, vector<2x8x8xf32>, vector<2x8x8xf32> -> vector<2x8x8xf32>
    "tpu.trace_stop"() : () -> ()
    %cst_43 = arith.constant dense<0xFF800000> : vector<2x8xf32>
    %63 = vector.multi_reduction <maximumf>, %62, %cst_43 [2] : vector<2x8x8xf32> to vector<2x8xf32>
    %64 = vector.shape_cast %63 : vector<2x8xf32> to vector<2x8x1xf32>
    %65 = vector.broadcast %64 : vector<2x8x1xf32> to vector<2x8x8xf32>
    %66 = arith.subf %62, %65 : vector<2x8x8xf32>
    %67 = math.exp %66 : vector<2x8x8xf32>
    %cst_44 = arith.constant dense<0.000000e+00> : vector<2x8xf32>
    %68 = vector.multi_reduction <add>, %67, %cst_44 [2] : vector<2x8x8xf32> to vector<2x8xf32>
    %69 = vector.shape_cast %68 : vector<2x8xf32> to vector<2x8x1xf32>
    %70 = vector.broadcast %69 : vector<2x8x1xf32> to vector<2x8x8xf32>
    %71 = arith.divf %67, %70 : vector<2x8x8xf32>
    "tpu.trace_start"() <{level = 10 : i32, message = "bqk,bkd->bqd"}> : () -> ()
    %cst_45 = arith.constant dense<0.000000e+00> : vector<2x8x8xf32>
    %72 = tpu.matmul %71, %61, %cst_45 {dimension_numbers = #tpu.dot_dimension_numbers<[2], [1], [1], [2], [0, 0, 0, 1, 1, 2], [0], [0]>} : vector<2x8x8xf32>, vector<2x8x8xf32>, vector<2x8x8xf32> -> vector<2x8x8xf32>
    "tpu.trace_stop"() : () -> ()
    %73 = vector.extract_strided_slice %44 {offsets = [0, 0, 16], sizes = [2, 8, 8], strides = [1, 1, 1]} : vector<2x8x96xf32> to vector<2x8x8xf32>
    %74 = vector.extract_strided_slice %44 {offsets = [0, 0, 48], sizes = [2, 8, 8], strides = [1, 1, 1]} : vector<2x8x96xf32> to vector<2x8x8xf32>
    %75 = vector.extract_strided_slice %44 {offsets = [0, 0, 80], sizes = [2, 8, 8], strides = [1, 1, 1]} : vector<2x8x96xf32> to vector<2x8x8xf32>
    "tpu.trace_start"() <{level = 10 : i32, message = "bqd,bkd->bqk"}> : () -> ()
    %cst_46 = arith.constant dense<0.000000e+00> : vector<2x8x8xf32>
    %76 = tpu.matmul %73, %74, %cst_46 {dimension_numbers = #tpu.dot_dimension_numbers<[2], [2], [1], [1], [0, 0, 0, 1, 1, 1], [0], [0]>} : vector<2x8x8xf32>, vector<2x8x8xf32>, vector<2x8x8xf32> -> vector<2x8x8xf32>
    "tpu.trace_stop"() : () -> ()
    %cst_47 = arith.constant dense<0xFF800000> : vector<2x8xf32>
    %77 = vector.multi_reduction <maximumf>, %76, %cst_47 [2] : vector<2x8x8xf32> to vector<2x8xf32>
    %78 = vector.shape_cast %77 : vector<2x8xf32> to vector<2x8x1xf32>
    %79 = vector.broadcast %78 : vector<2x8x1xf32> to vector<2x8x8xf32>
    %80 = arith.subf %76, %79 : vector<2x8x8xf32>
    %81 = math.exp %80 : vector<2x8x8xf32>
    %cst_48 = arith.constant dense<0.000000e+00> : vector<2x8xf32>
    %82 = vector.multi_reduction <add>, %81, %cst_48 [2] : vector<2x8x8xf32> to vector<2x8xf32>
    %83 = vector.shape_cast %82 : vector<2x8xf32> to vector<2x8x1xf32>
    %84 = vector.broadcast %83 : vector<2x8x1xf32> to vector<2x8x8xf32>
    %85 = arith.divf %81, %84 : vector<2x8x8xf32>
    "tpu.trace_start"() <{level = 10 : i32, message = "bqk,bkd->bqd"}> : () -> ()
    %cst_49 = arith.constant dense<0.000000e+00> : vector<2x8x8xf32>
    %86 = tpu.matmul %85, %75, %cst_49 {dimension_numbers = #tpu.dot_dimension_numbers<[2], [1], [1], [2], [0, 0, 0, 1, 1, 2], [0], [0]>} : vector<2x8x8xf32>, vector<2x8x8xf32>, vector<2x8x8xf32> -> vector<2x8x8xf32>
    "tpu.trace_stop"() : () -> ()
    %87 = vector.extract_strided_slice %44 {offsets = [0, 0, 24], sizes = [2, 8, 8], strides = [1, 1, 1]} : vector<2x8x96xf32> to vector<2x8x8xf32>
    %88 = vector.extract_strided_slice %44 {offsets = [0, 0, 56], sizes = [2, 8, 8], strides = [1, 1, 1]} : vector<2x8x96xf32> to vector<2x8x8xf32>
    %89 = vector.extract_strided_slice %44 {offsets = [0, 0, 88], sizes = [2, 8, 8], strides = [1, 1, 1]} : vector<2x8x96xf32> to vector<2x8x8xf32>
    "tpu.trace_start"() <{level = 10 : i32, message = "bqd,bkd->bqk"}> : () -> ()
    %cst_50 = arith.constant dense<0.000000e+00> : vector<2x8x8xf32>
    %90 = tpu.matmul %87, %88, %cst_50 {dimension_numbers = #tpu.dot_dimension_numbers<[2], [2], [1], [1], [0, 0, 0, 1, 1, 1], [0], [0]>} : vector<2x8x8xf32>, vector<2x8x8xf32>, vector<2x8x8xf32> -> vector<2x8x8xf32>
    "tpu.trace_stop"() : () -> ()
    %cst_51 = arith.constant dense<0xFF800000> : vector<2x8xf32>
    %91 = vector.multi_reduction <maximumf>, %90, %cst_51 [2] : vector<2x8x8xf32> to vector<2x8xf32>
    %92 = vector.shape_cast %91 : vector<2x8xf32> to vector<2x8x1xf32>
    %93 = vector.broadcast %92 : vector<2x8x1xf32> to vector<2x8x8xf32>
    %94 = arith.subf %90, %93 : vector<2x8x8xf32>
    %95 = math.exp %94 : vector<2x8x8xf32>
    %cst_52 = arith.constant dense<0.000000e+00> : vector<2x8xf32>
    %96 = vector.multi_reduction <add>, %95, %cst_52 [2] : vector<2x8x8xf32> to vector<2x8xf32>
    %97 = vector.shape_cast %96 : vector<2x8xf32> to vector<2x8x1xf32>
    %98 = vector.broadcast %97 : vector<2x8x1xf32> to vector<2x8x8xf32>
    %99 = arith.divf %95, %98 : vector<2x8x8xf32>
    "tpu.trace_start"() <{level = 10 : i32, message = "bqk,bkd->bqd"}> : () -> ()
    %cst_53 = arith.constant dense<0.000000e+00> : vector<2x8x8xf32>
    %100 = tpu.matmul %99, %89, %cst_53 {dimension_numbers = #tpu.dot_dimension_numbers<[2], [1], [1], [2], [0, 0, 0, 1, 1, 2], [0], [0]>} : vector<2x8x8xf32>, vector<2x8x8xf32>, vector<2x8x8xf32> -> vector<2x8x8xf32>
    "tpu.trace_stop"() : () -> ()
    %101 = tpu.concatenate %58, %72, %86, %100 in 2 : vector<2x8x8xf32>, vector<2x8x8xf32>, vector<2x8x8xf32>, vector<2x8x8xf32> -> vector<2x8x32xf32>
    %102 = vector.shape_cast %101 : vector<2x8x32xf32> to vector<16x32xf32>
    %cst_54 = arith.constant dense<0.000000e+00> : vector<16x32xf32>
    %103 = tpu.matmul %102, %3, %cst_54 {dimension_numbers = #tpu.dot_dimension_numbers<[1], [0], [0], [1], [0, 0, 1, 1], [], []>} : vector<16x32xf32>, vector<32x32xf32>, vector<16x32xf32> -> vector<16x32xf32>
    %104 = vector.broadcast %4 : vector<1x32xf32> to vector<16x32xf32>
    %105 = arith.addf %103, %104 : vector<16x32xf32>
    %cst_55 = arith.constant dense<0.000000e+00> : vector<16xf32>
    %106 = vector.multi_reduction <add>, %105, %cst_55 [1] : vector<16x32xf32> to vector<16xf32>
    %107 = vector.shape_cast %106 : vector<16xf32> to vector<16x1xf32>
    %cst_56 = arith.constant 3.200000e+01 : f32
    %108 = vector.broadcast %cst_56 : f32 to vector<16x1xf32>
    %109 = arith.divf %107, %108 : vector<16x1xf32>
    %110 = vector.broadcast %109 : vector<16x1xf32> to vector<16x32xf32>
    %111 = arith.subf %105, %110 : vector<16x32xf32>
    %112 = vector.broadcast %109 : vector<16x1xf32> to vector<16x32xf32>
    %113 = arith.subf %105, %112 : vector<16x32xf32>
    %114 = arith.mulf %111, %113 : vector<16x32xf32>
    %cst_57 = arith.constant dense<0.000000e+00> : vector<16xf32>
    %115 = vector.multi_reduction <add>, %114, %cst_57 [1] : vector<16x32xf32> to vector<16xf32>
    %116 = vector.shape_cast %115 : vector<16xf32> to vector<16x1xf32>
    %cst_58 = arith.constant 3.200000e+01 : f32
    %117 = vector.broadcast %cst_58 : f32 to vector<16x1xf32>
    %118 = arith.divf %116, %117 : vector<16x1xf32>
    %119 = vector.broadcast %109 : vector<16x1xf32> to vector<16x32xf32>
    %120 = arith.subf %105, %119 : vector<16x32xf32>
    %cst_59 = arith.constant 9.99999974E-6 : f32
    %121 = vector.broadcast %cst_59 : f32 to vector<16x1xf32>
    %122 = arith.addf %118, %121 : vector<16x1xf32>
    %123 = math.rsqrt %122 : vector<16x1xf32>
    %124 = vector.broadcast %123 : vector<16x1xf32> to vector<16x32xf32>
    %125 = arith.mulf %120, %124 : vector<16x32xf32>
    %126 = vector.broadcast %7 : vector<1x32xf32> to vector<16x32xf32>
    %127 = arith.mulf %125, %126 : vector<16x32xf32>
    %128 = vector.broadcast %8 : vector<1x32xf32> to vector<16x32xf32>
    %129 = arith.addf %127, %128 : vector<16x32xf32>
    %130 = arith.addf %0, %129 : vector<16x32xf32>
    %cst_60 = arith.constant dense<0.000000e+00> : vector<16xf32>
    %131 = vector.multi_reduction <add>, %130, %cst_60 [1] : vector<16x32xf32> to vector<16xf32>
    %132 = vector.shape_cast %131 : vector<16xf32> to vector<16x1xf32>
    %cst_61 = arith.constant 3.200000e+01 : f32
    %133 = vector.broadcast %cst_61 : f32 to vector<16x1xf32>
    %134 = arith.divf %132, %133 : vector<16x1xf32>
    %135 = vector.broadcast %134 : vector<16x1xf32> to vector<16x32xf32>
    %136 = arith.subf %130, %135 : vector<16x32xf32>
    %137 = vector.broadcast %134 : vector<16x1xf32> to vector<16x32xf32>
    %138 = arith.subf %130, %137 : vector<16x32xf32>
    %139 = arith.mulf %136, %138 : vector<16x32xf32>
    %cst_62 = arith.constant dense<0.000000e+00> : vector<16xf32>
    %140 = vector.multi_reduction <add>, %139, %cst_62 [1] : vector<16x32xf32> to vector<16xf32>
    %141 = vector.shape_cast %140 : vector<16xf32> to vector<16x1xf32>
    %cst_63 = arith.constant 3.200000e+01 : f32
    %142 = vector.broadcast %cst_63 : f32 to vector<16x1xf32>
    %143 = arith.divf %141, %142 : vector<16x1xf32>
    %144 = vector.broadcast %134 : vector<16x1xf32> to vector<16x32xf32>
    %145 = arith.subf %130, %144 : vector<16x32xf32>
    %cst_64 = arith.constant 9.99999974E-6 : f32
    %146 = vector.broadcast %cst_64 : f32 to vector<16x1xf32>
    %147 = arith.addf %143, %146 : vector<16x1xf32>
    %148 = math.rsqrt %147 : vector<16x1xf32>
    %149 = vector.broadcast %148 : vector<16x1xf32> to vector<16x32xf32>
    %150 = arith.mulf %145, %149 : vector<16x32xf32>
    %151 = vector.broadcast %9 : vector<1x32xf32> to vector<16x32xf32>
    %152 = arith.mulf %150, %151 : vector<16x32xf32>
    %153 = vector.broadcast %10 : vector<1x32xf32> to vector<16x32xf32>
    %154 = arith.addf %152, %153 : vector<16x32xf32>
    %cst_65 = arith.constant dense<0.000000e+00> : vector<16xf32>
    %155 = vector.multi_reduction <add>, %154, %cst_65 [1] : vector<16x32xf32> to vector<16xf32>
    %156 = vector.shape_cast %155 : vector<16xf32> to vector<16x1xf32>
    %cst_66 = arith.constant 3.200000e+01 : f32
    %157 = vector.broadcast %cst_66 : f32 to vector<16x1xf32>
    %158 = arith.divf %156, %157 : vector<16x1xf32>
    %159 = vector.broadcast %158 : vector<16x1xf32> to vector<16x32xf32>
    %160 = arith.subf %154, %159 : vector<16x32xf32>
    %161 = vector.broadcast %158 : vector<16x1xf32> to vector<16x32xf32>
    %162 = arith.subf %154, %161 : vector<16x32xf32>
    %163 = arith.mulf %160, %162 : vector<16x32xf32>
    %cst_67 = arith.constant dense<0.000000e+00> : vector<16xf32>
    %164 = vector.multi_reduction <add>, %163, %cst_67 [1] : vector<16x32xf32> to vector<16xf32>
    %165 = vector.shape_cast %164 : vector<16xf32> to vector<16x1xf32>
    %cst_68 = arith.constant 3.200000e+01 : f32
    %166 = vector.broadcast %cst_68 : f32 to vector<16x1xf32>
    %167 = arith.divf %165, %166 : vector<16x1xf32>
    %168 = vector.broadcast %158 : vector<16x1xf32> to vector<16x32xf32>
    %169 = arith.subf %154, %168 : vector<16x32xf32>
    %cst_69 = arith.constant 9.99999974E-6 : f32
    %170 = vector.broadcast %cst_69 : f32 to vector<16x1xf32>
    %171 = arith.addf %167, %170 : vector<16x1xf32>
    %172 = math.rsqrt %171 : vector<16x1xf32>
    %173 = vector.broadcast %172 : vector<16x1xf32> to vector<16x32xf32>
    %174 = arith.mulf %169, %173 : vector<16x32xf32>
    %175 = vector.broadcast %9 : vector<1x32xf32> to vector<16x32xf32>
    %176 = arith.mulf %174, %175 : vector<16x32xf32>
    %177 = vector.broadcast %10 : vector<1x32xf32> to vector<16x32xf32>
    %178 = arith.addf %176, %177 : vector<16x32xf32>
    %cst_70 = arith.constant dense<0.000000e+00> : vector<16x128xf32>
    %179 = tpu.matmul %178, %13, %cst_70 {dimension_numbers = #tpu.dot_dimension_numbers<[1], [0], [0], [1], [0, 0, 1, 1], [], []>} : vector<16x32xf32>, vector<32x128xf32>, vector<16x128xf32> -> vector<16x128xf32>
    %180 = vector.broadcast %14 : vector<1x128xf32> to vector<16x128xf32>
    %181 = arith.addf %179, %180 : vector<16x128xf32>
    %cst_71 = arith.constant 5.000000e-01 : f32
    %182 = vector.broadcast %cst_71 : f32 to vector<16x128xf32>
    %183 = arith.mulf %182, %181 : vector<16x128xf32>
    %cst_72 = arith.constant 0.707106769 : f32
    %184 = vector.broadcast %cst_72 : f32 to vector<16x128xf32>
    %185 = arith.mulf %181, %184 : vector<16x128xf32>
    %186 = math.absf %185 : vector<16x128xf32>
    %cst_73 = arith.constant 0.327591091 : f32
    %187 = vector.broadcast %cst_73 : f32 to vector<16x128xf32>
    %188 = arith.mulf %187, %186 : vector<16x128xf32>
    %cst_74 = arith.constant 1.000000e+00 : f32
    %189 = vector.broadcast %cst_74 : f32 to vector<16x128xf32>
    %190 = arith.addf %189, %188 : vector<16x128xf32>
    %cst_75 = arith.constant 1.000000e+00 : f32
    %191 = vector.broadcast %cst_75 : f32 to vector<16x128xf32>
    %192 = arith.divf %191, %190 : vector<16x128xf32>
    %cst_76 = arith.constant 1.06140542 : f32
    %193 = vector.broadcast %cst_76 : f32 to vector<16x128xf32>
    %194 = arith.mulf %193, %192 : vector<16x128xf32>
    %cst_77 = arith.constant -1.45315206 : f32
    %195 = vector.broadcast %cst_77 : f32 to vector<16x128xf32>
    %196 = arith.addf %194, %195 : vector<16x128xf32>
    %197 = arith.mulf %196, %192 : vector<16x128xf32>
    %cst_78 = arith.constant 1.42141378 : f32
    %198 = vector.broadcast %cst_78 : f32 to vector<16x128xf32>
    %199 = arith.addf %197, %198 : vector<16x128xf32>
    %200 = arith.mulf %199, %192 : vector<16x128xf32>
    %cst_79 = arith.constant -0.284496725 : f32
    %201 = vector.broadcast %cst_79 : f32 to vector<16x128xf32>
    %202 = arith.addf %200, %201 : vector<16x128xf32>
    %203 = arith.mulf %202, %192 : vector<16x128xf32>
    %cst_80 = arith.constant 0.254829586 : f32
    %204 = vector.broadcast %cst_80 : f32 to vector<16x128xf32>
    %205 = arith.addf %203, %204 : vector<16x128xf32>
    %206 = arith.mulf %205, %192 : vector<16x128xf32>
    %cst_81 = arith.constant 0.000000e+00 : f32
    %207 = vector.broadcast %cst_81 : f32 to vector<16x128xf32>
    %208 = arith.subf %207, %186 : vector<16x128xf32>
    %209 = arith.mulf %208, %186 : vector<16x128xf32>
    %210 = math.exp %209 : vector<16x128xf32>
    %211 = arith.mulf %206, %210 : vector<16x128xf32>
    %cst_82 = arith.constant 1.000000e+00 : f32
    %212 = vector.broadcast %cst_82 : f32 to vector<16x128xf32>
    %213 = arith.subf %212, %211 : vector<16x128xf32>
    %cst_83 = arith.constant 0.000000e+00 : f32
    %214 = vector.broadcast %cst_83 : f32 to vector<16x128xf32>
    %215 = arith.cmpf oge, %185, %214 : vector<16x128xf32>
    %cst_84 = arith.constant 0.000000e+00 : f32
    %216 = vector.broadcast %cst_84 : f32 to vector<16x128xf32>
    %217 = arith.subf %216, %213 : vector<16x128xf32>
    %218 = arith.select %215, %213, %217 : vector<16x128xi1>, vector<16x128xf32>
    %cst_85 = arith.constant 1.000000e+00 : f32
    %219 = vector.broadcast %cst_85 : f32 to vector<16x128xf32>
    %220 = arith.addf %219, %218 : vector<16x128xf32>
    %221 = arith.mulf %183, %220 : vector<16x128xf32>
    %cst_86 = arith.constant dense<0.000000e+00> : vector<16xf32>
    %222 = vector.multi_reduction <add>, %221, %cst_86 [1] : vector<16x128xf32> to vector<16xf32>
    %223 = vector.shape_cast %222 : vector<16xf32> to vector<16x1xf32>
    %cst_87 = arith.constant 1.280000e+02 : f32
    %224 = vector.broadcast %cst_87 : f32 to vector<16x1xf32>
    %225 = arith.divf %223, %224 : vector<16x1xf32>
    %226 = vector.broadcast %225 : vector<16x1xf32> to vector<16x128xf32>
    %227 = arith.subf %221, %226 : vector<16x128xf32>
    %228 = vector.broadcast %225 : vector<16x1xf32> to vector<16x128xf32>
    %229 = arith.subf %221, %228 : vector<16x128xf32>
    %230 = arith.mulf %227, %229 : vector<16x128xf32>
    %cst_88 = arith.constant dense<0.000000e+00> : vector<16xf32>
    %231 = vector.multi_reduction <add>, %230, %cst_88 [1] : vector<16x128xf32> to vector<16xf32>
    %232 = vector.shape_cast %231 : vector<16xf32> to vector<16x1xf32>
    %cst_89 = arith.constant 1.280000e+02 : f32
    %233 = vector.broadcast %cst_89 : f32 to vector<16x1xf32>
    %234 = arith.divf %232, %233 : vector<16x1xf32>
    %235 = vector.broadcast %225 : vector<16x1xf32> to vector<16x128xf32>
    %236 = arith.subf %221, %235 : vector<16x128xf32>
    %cst_90 = arith.constant 9.99999974E-6 : f32
    %237 = vector.broadcast %cst_90 : f32 to vector<16x1xf32>
    %238 = arith.addf %234, %237 : vector<16x1xf32>
    %239 = math.rsqrt %238 : vector<16x1xf32>
    %240 = vector.broadcast %239 : vector<16x1xf32> to vector<16x128xf32>
    %241 = arith.mulf %236, %240 : vector<16x128xf32>
    %242 = vector.broadcast %11 : vector<1x128xf32> to vector<16x128xf32>
    %243 = arith.mulf %241, %242 : vector<16x128xf32>
    %244 = vector.broadcast %12 : vector<1x128xf32> to vector<16x128xf32>
    %245 = arith.addf %243, %244 : vector<16x128xf32>
    %cst_91 = arith.constant dense<0.000000e+00> : vector<16x32xf32>
    %246 = tpu.matmul %245, %15, %cst_91 {dimension_numbers = #tpu.dot_dimension_numbers<[1], [0], [0], [1], [0, 0, 1, 1], [], []>} : vector<16x128xf32>, vector<128x32xf32>, vector<16x32xf32> -> vector<16x32xf32>
    %247 = arith.addf %130, %246 : vector<16x32xf32>
    %248 = vector.broadcast %16 : vector<1x32xf32> to vector<16x32xf32>
    %249 = arith.addf %247, %248 : vector<16x32xf32>
    %250 = vector.extract_strided_slice %249 {offsets = [0, 0], sizes = [4, 32], strides = [1, 1]} : vector<16x32xf32> to vector<4x32xf32>
    %251 = vector.extract_strided_slice %249 {offsets = [4, 0], sizes = [4, 32], strides = [1, 1]} : vector<16x32xf32> to vector<4x32xf32>
    %252 = vector.extract_strided_slice %249 {offsets = [8, 0], sizes = [4, 32], strides = [1, 1]} : vector<16x32xf32> to vector<4x32xf32>
    %253 = vector.extract_strided_slice %249 {offsets = [12, 0], sizes = [4, 32], strides = [1, 1]} : vector<16x32xf32> to vector<4x32xf32>
    %254 = tpu.concatenate %250, %251, %252, %253 in 1 : vector<4x32xf32>, vector<4x32xf32>, vector<4x32xf32>, vector<4x32xf32> -> vector<4x128xf32>
    %c0_92 = arith.constant 0 : index
    %c0_93 = arith.constant 0 : index
    %255 = vector.load %arg18[%c0_92, %c0_93] : memref<4x128xf32, #tpu.memory_space<vmem>>, vector<4x128xf32>
    tpu.vector_store %arg18[%c0_92, %c0_93], %254 {strides = array<i32>} : memref<4x128xf32, #tpu.memory_space<vmem>>, vector<4x128xf32>,
    return
  }
  func.func @transform_0(%arg0: i32) -> (i32, i32) {
    %c0_i32 = arith.constant 0 : i32
    %c0_i32_0 = arith.constant 0 : i32
    %c0_i32_1 = arith.constant 0 : i32
    return %c0_i32, %c0_i32_0 : i32, i32
  }
  func.func @transform_1(%arg0: i32) -> (i32, i32) {
    %c0_i32 = arith.constant 0 : i32
    %c0_i32_0 = arith.constant 0 : i32
    %c0_i32_1 = arith.constant 0 : i32
    return %c0_i32, %c0_i32_0 : i32, i32
  }
  func.func @transform_2(%arg0: i32) -> (i32, i32) {
    %c0_i32 = arith.constant 0 : i32
    %c0_i32_0 = arith.constant 0 : i32
    %c0_i32_1 = arith.constant 0 : i32
    return %c0_i32, %c0_i32_0 : i32, i32
  }
  func.func @transform_3(%arg0: i32) -> (i32, i32) {
    %c0_i32 = arith.constant 0 : i32
    %c0_i32_0 = arith.constant 0 : i32
    %c0_i32_1 = arith.constant 0 : i32
    return %c0_i32, %c0_i32_0 : i32, i32
  }
  func.func @transform_4(%arg0: i32) -> (i32, i32) {
    %c0_i32 = arith.constant 0 : i32
    %c0_i32_0 = arith.constant 0 : i32
    %c0_i32_1 = arith.constant 0 : i32
    return %c0_i32, %c0_i32_0 : i32, i32
  }
  func.func @transform_5(%arg0: i32) -> (i32, i32) {
    %c0_i32 = arith.constant 0 : i32
    %c0_i32_0 = arith.constant 0 : i32
    %c0_i32_1 = arith.constant 0 : i32
    return %c0_i32, %c0_i32_0 : i32, i32
  }
  func.func @transform_6(%arg0: i32) -> (i32, i32) {
    %c0_i32 = arith.constant 0 : i32
    %c0_i32_0 = arith.constant 0 : i32
    %c0_i32_1 = arith.constant 0 : i32
    return %c0_i32, %c0_i32_0 : i32, i32
  }
  func.func @transform_7(%arg0: i32) -> (i32, i32) {
    %c0_i32 = arith.constant 0 : i32
    %c0_i32_0 = arith.constant 0 : i32
    %c0_i32_1 = arith.constant 0 : i32
    return %c0_i32, %c0_i32_0 : i32, i32
  }
  func.func @transform_8(%arg0: i32) -> (i32, i32) {
    %c0_i32 = arith.constant 0 : i32
    %c0_i32_0 = arith.constant 0 : i32
    %c0_i32_1 = arith.constant 0 : i32
    return %c0_i32, %c0_i32_0 : i32, i32
  }
  func.func @transform_9(%arg0: i32) -> (i32, i32) {
    %c0_i32 = arith.constant 0 : i32
    %c0_i32_0 = arith.constant 0 : i32
    %c0_i32_1 = arith.constant 0 : i32
    return %c0_i32, %c0_i32_0 : i32, i32
  }
  func.func @transform_10(%arg0: i32) -> (i32, i32) {
    %c0_i32 = arith.constant 0 : i32
    %c0_i32_0 = arith.constant 0 : i32
    %c0_i32_1 = arith.constant 0 : i32
    return %c0_i32, %c0_i32_0 : i32, i32
  }
  func.func @transform_11(%arg0: i32) -> (i32, i32) {
    %c0_i32 = arith.constant 0 : i32
    %c0_i32_0 = arith.constant 0 : i32
    %c0_i32_1 = arith.constant 0 : i32
    return %c0_i32, %c0_i32_0 : i32, i32
  }
  func.func @transform_12(%arg0: i32) -> (i32, i32) {
    %c0_i32 = arith.constant 0 : i32
    %c0_i32_0 = arith.constant 0 : i32
    %c0_i32_1 = arith.constant 0 : i32
    return %c0_i32, %c0_i32_0 : i32, i32
  }
  func.func @transform_13(%arg0: i32) -> (i32, i32) {
    %c0_i32 = arith.constant 0 : i32
    %c0_i32_0 = arith.constant 0 : i32
    %c0_i32_1 = arith.constant 0 : i32
    return %c0_i32, %c0_i32_0 : i32, i32
  }
  func.func @transform_14(%arg0: i32) -> (i32, i32) {
    %c0_i32 = arith.constant 0 : i32
    %c0_i32_0 = arith.constant 0 : i32
    %c0_i32_1 = arith.constant 0 : i32
    return %c0_i32, %c0_i32_0 : i32, i32
  }
  func.func @transform_15(%arg0: i32) -> (i32, i32) {
    %c0_i32 = arith.constant 0 : i32
    %c0_i32_0 = arith.constant 0 : i32
    %c0_i32_1 = arith.constant 0 : i32
    return %c0_i32, %c0_i32_0 : i32, i32
  }
  func.func @transform_16(%arg0: i32) -> (i32, i32) {
    %c0_i32 = arith.constant 0 : i32
    %c0_i32_0 = arith.constant 0 : i32
    %c0_i32_1 = arith.constant 0 : i32
    return %c0_i32, %c0_i32_0 : i32, i32
  }
  func.func @transform_17(%arg0: i32) -> (i32, i32) {
    %c0_i32 = arith.constant 0 : i32
    %c0_i32_0 = arith.constant 0 : i32
    %c0_i32_1 = arith.constant 0 : i32
    return %c0_i32, %c0_i32_0 : i32, i32
  }
}

</mosaic_0001>

<llo_original>
// kernel: tpu_custom_call.1
$region0: #{tpu_custom_call.1}
  #allocation0 [shape = 'u32[]', space=smem, size = 0x4, offset = 0x4, fixed_abs, tag = 'smem constant byte address 0x4 - core index']
  #allocation1 [shape = 'u32[144,128]{1,0:T(1,128)}', space=vmem, size = 0x12000, scoped, tag = 'internal scratch']
  %s0 = inlined_call_operand.vmem [shape: f32[16,32], index: 0, kind: input, shape index: {}]
  %s1 = inlined_call_operand.vmem [shape: f32[32,96], index: 1, kind: input, shape index: {}]
  %s2 = inlined_call_operand.vmem [shape: f32[1,96], index: 2, kind: input, shape index: {}]
  %s3 = inlined_call_operand.vmem [shape: f32[32,32], index: 3, kind: input, shape index: {}]
  %s4 = inlined_call_operand.vmem [shape: f32[1,32], index: 4, kind: input, shape index: {}]
  %s5 = inlined_call_operand.vmem [shape: f32[1,32], index: 5, kind: input, shape index: {}]
  %s6 = inlined_call_operand.vmem [shape: f32[1,32], index: 6, kind: input, shape index: {}]
  %s7 = inlined_call_operand.vmem [shape: f32[1,32], index: 7, kind: input, shape index: {}]
  %s8 = inlined_call_operand.vmem [shape: f32[1,32], index: 8, kind: input, shape index: {}]
  %s9 = inlined_call_operand.vmem [shape: f32[1,32], index: 9, kind: input, shape index: {}]
  %s10 = inlined_call_operand.vmem [shape: f32[1,32], index: 10, kind: input, shape index: {}]
  %s11 = inlined_call_operand.vmem [shape: f32[1,128], index: 11, kind: input, shape index: {}]
  %s12 = inlined_call_operand.vmem [shape: f32[1,128], index: 12, kind: input, shape index: {}]
  %s13 = inlined_call_operand.vmem [shape: f32[32,128], index: 13, kind: input, shape index: {}]
  %s14 = inlined_call_operand.vmem [shape: f32[1,128], index: 14, kind: input, shape index: {}]
  %s15 = inlined_call_operand.vmem [shape: f32[128,32], index: 15, kind: input, shape index: {}]
  %s16 = inlined_call_operand.vmem [shape: f32[1,32], index: 16, kind: input, shape index: {}]
  %s17 = inlined_call_operand.hbm [shape: f32[4,128], index: 17, kind: output, shape index: {}]
  %s18 = sld [smem:[#allocation0]]
  $region78: #{tpu_custom_call.1} parent=0
    _
  %s20 = ssub.s32 1, %s18
  %s21 = scalar_select 0, %s20, %s18
  $region1: #{tpu_custom_call.1} parent=0
    #allocation2 [shape = 'u8[2048]{0}', space=vmem, size = 0x800, scoped, tag = 'output window, operand 0, single buffered']
    #allocation3 [shape = 's32[1]{0}', space=sflag, size = 0x4, scoped, tag = 'scoped memory for tpu_custom_call.1']
    %22 = vsyncpa [#allocation3], 0
    // Predicated region
    $region2: #{tpu_custom_call.1} parent=1 // pred_check
      _
    $region3: #{tpu_custom_call.1} parent=1 // pred_check_branch
      %24 = sbr.rel (0) target = $region5
    $region4: #{tpu_custom_call.1} parent=1 // pred_region
      _
    $region5: #{tpu_custom_call.1} parent=1 // pred_fallthru
      _
    // Predicated region
    $region6: #{tpu_custom_call.1} parent=1 // pred_check
      _
    $region7: #{tpu_custom_call.1} parent=1 // pred_check_branch
      %26 = sbr.rel (0) target = $region9
    $region8: #{tpu_custom_call.1} parent=1 // pred_region
      _
    $region9: #{tpu_custom_call.1} parent=1 // pred_fallthru
      _
    // Predicated region
    $region10: #{tpu_custom_call.1} parent=1 // pred_check
      _
    $region11: #{tpu_custom_call.1} parent=1 // pred_check_branch
      %28 = sbr.rel (0) target = $region13
    $region12: #{tpu_custom_call.1} parent=1 // pred_region
      _
    $region13: #{tpu_custom_call.1} parent=1 // pred_fallthru
      _
    // Predicated region
    $region14: #{tpu_custom_call.1} parent=1 // pred_check
      _
    $region15: #{tpu_custom_call.1} parent=1 // pred_check_branch
      %30 = sbr.rel (0) target = $region17
    $region16: #{tpu_custom_call.1} parent=1 // pred_region
      _
    $region17: #{tpu_custom_call.1} parent=1 // pred_fallthru
      _
    // Predicated region
    $region18: #{tpu_custom_call.1} parent=1 // pred_check
      _
    $region19: #{tpu_custom_call.1} parent=1 // pred_check_branch
      %32 = sbr.rel (0) target = $region21
    $region20: #{tpu_custom_call.1} parent=1 // pred_region
      _
    $region21: #{tpu_custom_call.1} parent=1 // pred_fallthru
      _
    // Predicated region
    $region22: #{tpu_custom_call.1} parent=1 // pred_check
      _
    $region23: #{tpu_custom_call.1} parent=1 // pred_check_branch
      %34 = sbr.rel (0) target = $region25
    $region24: #{tpu_custom_call.1} parent=1 // pred_region
      _
    $region25: #{tpu_custom_call.1} parent=1 // pred_fallthru
      _
    // Predicated region
    $region26: #{tpu_custom_call.1} parent=1 // pred_check
      _
    $region27: #{tpu_custom_call.1} parent=1 // pred_check_branch
      %36 = sbr.rel (0) target = $region29
    $region28: #{tpu_custom_call.1} parent=1 // pred_region
      _
    $region29: #{tpu_custom_call.1} parent=1 // pred_fallthru
      _
    // Predicated region
    $region30: #{tpu_custom_call.1} parent=1 // pred_check
      _
    $region31: #{tpu_custom_call.1} parent=1 // pred_check_branch
      %38 = sbr.rel (0) target = $region33
    $region32: #{tpu_custom_call.1} parent=1 // pred_region
      _
    $region33: #{tpu_custom_call.1} parent=1 // pred_fallthru
      _
    // Predicated region
    $region34: #{tpu_custom_call.1} parent=1 // pred_check
      _
    $region35: #{tpu_custom_call.1} parent=1 // pred_check_branch
      %40 = sbr.rel (0) target = $region37
    $region36: #{tpu_custom_call.1} parent=1 // pred_region
      _
    $region37: #{tpu_custom_call.1} parent=1 // pred_fallthru
      _
    // Predicated region
    $region38: #{tpu_custom_call.1} parent=1 // pred_check
      _
    $region39: #{tpu_custom_call.1} parent=1 // pred_check_branch
      %42 = sbr.rel (0) target = $region41
    $region40: #{tpu_custom_call.1} parent=1 // pred_region
      _
    $region41: #{tpu_custom_call.1} parent=1 // pred_fallthru
      _
    // Predicated region
    $region42: #{tpu_custom_call.1} parent=1 // pred_check
      _
    $region43: #{tpu_custom_call.1} parent=1 // pred_check_branch
      %44 = sbr.rel (0) target = $region45
    $region44: #{tpu_custom_call.1} parent=1 // pred_region
      _
    $region45: #{tpu_custom_call.1} parent=1 // pred_fallthru
      _
    // Predicated region
    $region46: #{tpu_custom_call.1} parent=1 // pred_check
      _
    $region47: #{tpu_custom_call.1} parent=1 // pred_check_branch
      %46 = sbr.rel (0) target = $region49
    $region48: #{tpu_custom_call.1} parent=1 // pred_region
      _
    $region49: #{tpu_custom_call.1} parent=1 // pred_fallthru
      _
    // Predicated region
    $region50: #{tpu_custom_call.1} parent=1 // pred_check
      _
    $region51: #{tpu_custom_call.1} parent=1 // pred_check_branch
      %48 = sbr.rel (0) target = $region53
    $region52: #{tpu_custom_call.1} parent=1 // pred_region
      _
    $region53: #{tpu_custom_call.1} parent=1 // pred_fallthru
      _
    // Predicated region
    $region54: #{tpu_custom_call.1} parent=1 // pred_check
      _
    $region55: #{tpu_custom_call.1} parent=1 // pred_check_branch
      %50 = sbr.rel (0) target = $region57
    $region56: #{tpu_custom_call.1} parent=1 // pred_region
      _
    $region57: #{tpu_custom_call.1} parent=1 // pred_fallthru
      _
    // Predicated region
    $region58: #{tpu_custom_call.1} parent=1 // pred_check
      _
    $region59: #{tpu_custom_call.1} parent=1 // pred_check_branch
      %52 = sbr.rel (0) target = $region61
    $region60: #{tpu_custom_call.1} parent=1 // pred_region
      _
    $region61: #{tpu_custom_call.1} parent=1 // pred_fallthru
      _
    // Predicated region
    $region62: #{tpu_custom_call.1} parent=1 // pred_check
      _
    $region63: #{tpu_custom_call.1} parent=1 // pred_check_branch
      %54 = sbr.rel (0) target = $region65
    $region64: #{tpu_custom_call.1} parent=1 // pred_region
      _
    $region65: #{tpu_custom_call.1} parent=1 // pred_fallthru
      _
    // Predicated region
    $region66: #{tpu_custom_call.1} parent=1 // pred_check
      _
    $region67: #{tpu_custom_call.1} parent=1 // pred_check_branch
      %56 = sbr.rel (0) target = $region69
    $region68: #{tpu_custom_call.1} parent=1 // pred_region
      _
    $region69: #{tpu_custom_call.1} parent=1 // pred_fallthru
      _
    %v57 = vld [vmem:[%s0] sm:$0xff]
    %v58 = vld [vmem:[%s0 + $0x8] sm:$0xff]
    %v59 = vld [vmem:[%s1] sm:$0xff]
    %v60 = vld [vmem:[%s1 + $0x8] sm:$0xff]
    %v61 = vld [vmem:[%s1 + $0x10] sm:$0xff]
    %v62 = vld [vmem:[%s1 + $0x18] sm:$0xff]
    %v63 = vld [vmem:[%s2] sm:$0x1]
    %v64 = vld [vmem:[%s3] sm:$0xff]
    %v65 = vld [vmem:[%s3 + $0x8] sm:$0xff]
    %v66 = vld [vmem:[%s3 + $0x10] sm:$0xff]
    %v67 = vld [vmem:[%s3 + $0x18] sm:$0xff]
    %v68 = vld [vmem:[%s4] sm:$0x1]
    %v69 = vld [vmem:[%s5] sm:$0x1]
    %v70 = vld [vmem:[%s6] sm:$0x1]
    %v71 = vld [vmem:[%s7] sm:$0x1]
    %v72 = vld [vmem:[%s8] sm:$0x1]
    %v73 = vld [vmem:[%s9] sm:$0x1]
    %v74 = vld [vmem:[%s10] sm:$0x1]
    %v75 = vld [vmem:[%s11] sm:$0x1]
    %v76 = vld [vmem:[%s12] sm:$0x1]
    %v77 = vld [vmem:[%s13] sm:$0xff]
    %v78 = vld [vmem:[%s13 + $0x8] sm:$0xff]
    %v79 = vld [vmem:[%s13 + $0x10] sm:$0xff]
    %v80 = vld [vmem:[%s13 + $0x18] sm:$0xff]
    %v81 = vld [vmem:[%s14] sm:$0x1]
    %v82 = vld [vmem:[%s15] sm:$0xff]
    %v83 = vld [vmem:[%s15 + $0x8] sm:$0xff]
    %v84 = vld [vmem:[%s15 + $0x10] sm:$0xff]
    %v85 = vld [vmem:[%s15 + $0x18] sm:$0xff]
    %v86 = vld [vmem:[%s15 + $0x20] sm:$0xff]
    %v87 = vld [vmem:[%s15 + $0x28] sm:$0xff]
    %v88 = vld [vmem:[%s15 + $0x30] sm:$0xff]
    %v89 = vld [vmem:[%s15 + $0x38] sm:$0xff]
    %v90 = vld [vmem:[%s15 + $0x40] sm:$0xff]
    %v91 = vld [vmem:[%s15 + $0x48] sm:$0xff]
    %v92 = vld [vmem:[%s15 + $0x50] sm:$0xff]
    %v93 = vld [vmem:[%s15 + $0x58] sm:$0xff]
    %v94 = vld [vmem:[%s15 + $0x60] sm:$0xff]
    %v95 = vld [vmem:[%s15 + $0x68] sm:$0xff]
    %v96 = vld [vmem:[%s15 + $0x70] sm:$0xff]
    %v97 = vld [vmem:[%s15 + $0x78] sm:$0xff]
    %v98 = vld [vmem:[%s16] sm:$0x1]
    %vm99 = vcmask 261120
    %v100 = vsel %vm99, %v57, 0.0
    %101 = vadd.xlane.f32.xlu0 %v100
    %v102 = vpop.xlane.xlu0 %101
    %v103 = vsel %vm99, %v58, 0.0
    %104 = vadd.xlane.f32.xlu0 %v103
    %v105 = vpop.xlane.xlu0 %104
    %v106 = vrcp.pop 32.0
    %v107 = vmul.f32 %v102, %v106
    %v108 = vmul.f32 %v105, %v106
    %v109 = vsub.f32 %v57, %v107
    %v110 = vsub.f32 %v58, %v108
    %v111 = vmul.f32 %v109, %v109
    %v112 = vmul.f32 %v110, %v110
    %v113 = vsel %vm99, %v111, 0.0
    %114 = vadd.xlane.f32.xlu0 %v113
    %v115 = vpop.xlane.xlu0 %114
    %v116 = vsel %vm99, %v112, 0.0
    %117 = vadd.xlane.f32.xlu0 %v116
    %v118 = vpop.xlane.xlu0 %117
    %v119 = vmul.f32 %v115, %v106
    %v120 = vmul.f32 %v118, %v106
    %v121 = vadd.f32 %v119, 1e-05
    %v122 = vadd.f32 %v120, 1e-05
    %v123 = vrsqrt.pop %v121
    %v124 = vrsqrt.pop %v122
    %v125 = vmul.f32 %v109, %v123
    %v126 = vmul.f32 %v110, %v124
    %v128 = vlaneseq
    %v129 = vshrl.u32 %v128, 7
    %v130 = vsub.s32 0, %v129
    %v131 = vrot.slane %v69, %v130
    %v133 = vmul.f32 %v125, %v131
    %v134 = vmul.f32 %v126, %v131
    %v136 = vlaneseq
    %v137 = vshrl.u32 %v136, 7
    %v138 = vsub.s32 0, %v137
    %v139 = vrot.slane %v70, %v138
    %v141 = vadd.f32 %v133, %v139
    %v142 = vadd.f32 %v134, %v139
    %v144 = vlaneseq
    %v145 = vshrl.u32 %v144, 7
    %v146 = vsub.s32 0, %v145
    %v147 = vrot.slane %v63, %v146
    %v150 = vsel %vm99, %v141, 0
    %v153 = vsel %vm99, %v142, 0
    %155 = vmatprep.subr.mxu0 0.0
    %156 = vmatpush1.msra.mxu0 %v59
    %157 = vmatprep.subr.mxu0 0.0
    %158 = vmatpush1.msra.mxu0 %v60
    %159 = vmatprep.subr.mxu0 0.0
    %160 = vmatpush1.msra.mxu0 %v61
    %161 = vmatprep.subr.mxu0 0.0
    %162 = vmatpush1.msra.mxu0 %v62
    %163 = vmatprep.subr.mxu0 0.0
    %164 = vmatpush1.msra.mxu0 0.0
    %165 = vmatprep.subr.mxu0 0.0
    %166 = vmatpush1.msra.mxu0 0.0
    %167 = vmatprep.subr.mxu0 0.0
    %168 = vmatpush1.msra.mxu0 0.0
    %169 = vmatprep.subr.mxu0 0.0
    %170 = vmatpush1.msra.mxu0 0.0
    %171 = vmatprep.subr.mxu0 0.0
    %172 = vmatpush1.msra.mxu0 0.0
    %173 = vmatprep.subr.mxu0 0.0
    %174 = vmatpush1.msra.mxu0 0.0
    %175 = vmatprep.subr.mxu0 0.0
    %176 = vmatpush1.msra.mxu0 0.0
    %177 = vmatprep.subr.mxu0 0.0
    %178 = vmatpush1.msra.mxu0 0.0
    %179 = vmatprep.subr.mxu0 0.0
    %180 = vmatpush1.msra.mxu0 0.0
    %181 = vmatprep.subr.mxu0 0.0
    %182 = vmatpush1.msra.mxu0 0.0
    %183 = vmatprep.subr.mxu0 0.0
    %184 = vmatpush1.msra.mxu0 0.0
    %185 = vmatprep.subr.mxu0 0.0
    %186 = vmatpush1.msra.mxu0 0.0
    %187 = vmatprep.subr.mxu0 0.0
    %188 = vmatpush1.msra.mxu0 0.0
    %189 = vmatprep.subr.mxu0 0.0
    %190 = vmatpush1.msra.mxu0 0.0
    %191 = vmatprep.subr.mxu0 0.0
    %192 = vmatpush1.msra.mxu0 0.0
    %193 = vmatprep.subr.mxu0 0.0
    %194 = vmatpush1.msra.mxu0 0.0
    %195 = vmatprep.subr.mxu0 0.0
    %196 = vmatpush1.msra.mxu0 0.0
    %197 = vmatprep.subr.mxu0 0.0
    %198 = vmatpush1.msra.mxu0 0.0
    %199 = vmatprep.subr.mxu0 0.0
    %200 = vmatpush1.msra.mxu0 0.0
    %201 = vmatprep.subr.mxu0 0.0
    %202 = vmatpush1.msra.mxu0 0.0
    %203 = vmatprep.subr.mxu0 0.0
    %204 = vmatpush1.msra.mxu0 0.0
    %205 = vmatprep.subr.mxu0 0.0
    %206 = vmatpush1.msra.mxu0 0.0
    %207 = vmatprep.subr.mxu0 0.0
    %208 = vmatpush1.msra.mxu0 0.0
    %209 = vmatprep.subr.mxu0 0.0
    %210 = vmatpush1.msra.mxu0 0.0
    %211 = vmatprep.subr.mxu0 0.0
    %212 = vmatpush1.msra.mxu0 0.0
    %213 = vmatprep.subr.mxu0 0.0
    %214 = vmatpush1.msra.mxu0 0.0
    %215 = vmatprep.subr.mxu0 0.0
    %216 = vmatpush1.msra.mxu0 0.0
    %217 = vmatprep.subr.mxu0 0.0
    %218 = vmatpush1.msra.mxu0 0.0
    %219 = vmatprep.mubr.f32.mxu0 0.0
    %220 = vmatmul.mubr.f32.gmra.mrb[0].mxu0 %v150
    %v221 = vpop.f32.mrb[0].mxu0
    %v222 = vadd.f32 %v147, %v221
    %v223 = vpop.f32.mrb[0].mxu0
    %224 = vmatprep.mubr.f32.mxu0 0.0
    %225 = vmatmul.mubr.f32.gmra.mrb[0].mxu0 %v153
    %v226 = vpop.f32.mrb[0].mxu0
    %v227 = vadd.f32 %v147, %v226
    %v228 = vpop.f32.mrb[0].mxu0
    %229 = vdwg.mxu0
    %231 = vrot.lane.b32.xlu0 %v222, 96
    %v232 = vpop.permute.xlu0 %231
    %vm233 = vcmask 64512
    %v234 = vsel %vm233, %v222, 0
    %v236 = vsel %vm233, %v232, 0
    %238 = vmatprep.subr.mxu0 0.0
    %239 = vmatpush1.xpose.msra.mxu0 %v236
    %240 = vmatprep.subr.mxu0 0.0
    %241 = vmatpush1.xpose.msra.mxu0 0.0
    %242 = vmatprep.subr.mxu0 0.0
    %243 = vmatpush1.xpose.msra.mxu0 0.0
    %244 = vmatprep.subr.mxu0 0.0
    %245 = vmatpush1.xpose.msra.mxu0 0.0
    %246 = vmatprep.subr.mxu0 0.0
    %247 = vmatpush1.xpose.msra.mxu0 0.0
    %248 = vmatprep.subr.mxu0 0.0
    %249 = vmatpush1.xpose.msra.mxu0 0.0
    %250 = vmatprep.subr.mxu0 0.0
    %251 = vmatpush1.xpose.msra.mxu0 0.0
    %252 = vmatprep.subr.mxu0 0.0
    %253 = vmatpush1.xpose.msra.mxu0 0.0
    %254 = vmatprep.subr.mxu0 0.0
    %255 = vmatpush1.xpose.msra.mxu0 0.0
    %256 = vmatprep.subr.mxu0 0.0
    %257 = vmatpush1.xpose.msra.mxu0 0.0
    %258 = vmatprep.subr.mxu0 0.0
    %259 = vmatpush1.xpose.msra.mxu0 0.0
    %260 = vmatprep.subr.mxu0 0.0
    %261 = vmatpush1.xpose.msra.mxu0 0.0
    %262 = vmatprep.subr.mxu0 0.0
    %263 = vmatpush1.xpose.msra.mxu0 0.0
    %264 = vmatprep.subr.mxu0 0.0
    %265 = vmatpush1.xpose.msra.mxu0 0.0
    %266 = vmatprep.subr.mxu0 0.0
    %267 = vmatpush1.xpose.msra.mxu0 0.0
    %268 = vmatprep.subr.mxu0 0.0
    %269 = vmatpush1.xpose.msra.mxu0 0.0
    %270 = vmatprep.subr.mxu0 0.0
    %271 = vmatpush1.xpose.msra.mxu0 0.0
    %272 = vmatprep.subr.mxu0 0.0
    %273 = vmatpush1.xpose.msra.mxu0 0.0
    %274 = vmatprep.subr.mxu0 0.0
    %275 = vmatpush1.xpose.msra.mxu0 0.0
    %276 = vmatprep.subr.mxu0 0.0
    %277 = vmatpush1.xpose.msra.mxu0 0.0
    %278 = vmatprep.subr.mxu0 0.0
    %279 = vmatpush1.xpose.msra.mxu0 0.0
    %280 = vmatprep.subr.mxu0 0.0
    %281 = vmatpush1.xpose.msra.mxu0 0.0
    %282 = vmatprep.subr.mxu0 0.0
    %283 = vmatpush1.xpose.msra.mxu0 0.0
    %284 = vmatprep.subr.mxu0 0.0
    %285 = vmatpush1.xpose.msra.mxu0 0.0
    %286 = vmatprep.subr.mxu0 0.0
    %287 = vmatpush1.xpose.msra.mxu0 0.0
    %288 = vmatprep.subr.mxu0 0.0
    %289 = vmatpush1.xpose.msra.mxu0 0.0
    %290 = vmatprep.subr.mxu0 0.0
    %291 = vmatpush1.xpose.msra.mxu0 0.0
    %292 = vmatprep.subr.mxu0 0.0
    %293 = vmatpush1.xpose.msra.mxu0 0.0
    %294 = vmatprep.subr.mxu0 0.0
    %295 = vmatpush1.xpose.msra.mxu0 0.0
    %296 = vmatprep.subr.mxu0 0.0
    %297 = vmatpush1.xpose.msra.mxu0 0.0
    %298 = vmatprep.subr.mxu0 0.0
    %299 = vmatpush1.xpose.msra.mxu0 0.0
    %300 = vmatprep.subr.mxu0 0.0
    %301 = vmatpush1.xpose.msra.mxu0 0.0
    %302 = vmatprep.mubr.f32.mxu0 0.0
    %303 = vmatmul.mubr.f32.gmra.mrb[0].mxu0 %v234
    %v304 = vpop.f32.mrb[0].mxu0
    %v305 = vadd.f32 0.0, %v304
    %v306 = vpop.f32.mrb[0].mxu0
    %307 = vdwg.mxu0
    %309 = vrot.lane.b32.xlu0 %v227, 96
    %v310 = vpop.permute.xlu0 %309
    %v311 = vsel %vm233, %v227, 0
    %v313 = vsel %vm233, %v310, 0
    %315 = vmatprep.subr.mxu0 0.0
    %316 = vmatpush1.xpose.msra.mxu0 %v313
    %317 = vmatprep.subr.mxu0 0.0
    %318 = vmatpush1.xpose.msra.mxu0 0.0
    %319 = vmatprep.subr.mxu0 0.0
    %320 = vmatpush1.xpose.msra.mxu0 0.0
    %321 = vmatprep.subr.mxu0 0.0
    %322 = vmatpush1.xpose.msra.mxu0 0.0
    %323 = vmatprep.subr.mxu0 0.0
    %324 = vmatpush1.xpose.msra.mxu0 0.0
    %325 = vmatprep.subr.mxu0 0.0
    %326 = vmatpush1.xpose.msra.mxu0 0.0
    %327 = vmatprep.subr.mxu0 0.0
    %328 = vmatpush1.xpose.msra.mxu0 0.0
    %329 = vmatprep.subr.mxu0 0.0
    %330 = vmatpush1.xpose.msra.mxu0 0.0
    %331 = vmatprep.subr.mxu0 0.0
    %332 = vmatpush1.xpose.msra.mxu0 0.0
    %333 = vmatprep.subr.mxu0 0.0
    %334 = vmatpush1.xpose.msra.mxu0 0.0
    %335 = vmatprep.subr.mxu0 0.0
    %336 = vmatpush1.xpose.msra.mxu0 0.0
    %337 = vmatprep.subr.mxu0 0.0
    %338 = vmatpush1.xpose.msra.mxu0 0.0
    %339 = vmatprep.subr.mxu0 0.0
    %340 = vmatpush1.xpose.msra.mxu0 0.0
    %341 = vmatprep.subr.mxu0 0.0
    %342 = vmatpush1.xpose.msra.mxu0 0.0
    %343 = vmatprep.subr.mxu0 0.0
    %344 = vmatpush1.xpose.msra.mxu0 0.0
    %345 = vmatprep.subr.mxu0 0.0
    %346 = vmatpush1.xpose.msra.mxu0 0.0
    %347 = vmatprep.subr.mxu0 0.0
    %348 = vmatpush1.xpose.msra.mxu0 0.0
    %349 = vmatprep.subr.mxu0 0.0
    %350 = vmatpush1.xpose.msra.mxu0 0.0
    %351 = vmatprep.subr.mxu0 0.0
    %352 = vmatpush1.xpose.msra.mxu0 0.0
    %353 = vmatprep.subr.mxu0 0.0
    %354 = vmatpush1.xpose.msra.mxu0 0.0
    %355 = vmatprep.subr.mxu0 0.0
    %356 = vmatpush1.xpose.msra.mxu0 0.0
    %357 = vmatprep.subr.mxu0 0.0
    %358 = vmatpush1.xpose.msra.mxu0 0.0
    %359 = vmatprep.subr.mxu0 0.0
    %360 = vmatpush1.xpose.msra.mxu0 0.0
    %361 = vmatprep.subr.mxu0 0.0
    %362 = vmatpush1.xpose.msra.mxu0 0.0
    %363 = vmatprep.subr.mxu0 0.0
    %364 = vmatpush1.xpose.msra.mxu0 0.0
    %365 = vmatprep.subr.mxu0 0.0
    %366 = vmatpush1.xpose.msra.mxu0 0.0
    %367 = vmatprep.subr.mxu0 0.0
    %368 = vmatpush1.xpose.msra.mxu0 0.0
    %369 = vmatprep.subr.mxu0 0.0
    %370 = vmatpush1.xpose.msra.mxu0 0.0
    %371 = vmatprep.subr.mxu0 0.0
    %372 = vmatpush1.xpose.msra.mxu0 0.0
    %373 = vmatprep.subr.mxu0 0.0
    %374 = vmatpush1.xpose.msra.mxu0 0.0
    %375 = vmatprep.subr.mxu0 0.0
    %376 = vmatpush1.xpose.msra.mxu0 0.0
    %377 = vmatprep.subr.mxu0 0.0
    %378 = vmatpush1.xpose.msra.mxu0 0.0
    %379 = vmatprep.mubr.f32.mxu0 0.0
    %380 = vmatmul.mubr.f32.gmra.mrb[0].mxu0 %v311
    %v381 = vpop.f32.mrb[0].mxu0
    %v382 = vadd.f32 0.0, %v381
    %v383 = vpop.f32.mrb[0].mxu0
    %384 = vdwg.mxu0
    %v385 = vsel %vm233, %v305, -inf
    %386 = vmax.xlane.f32.xlu0 %v385
    %v387 = vpop.xlane.xlu0 %386
    %v388 = vsel %vm233, %v382, -inf
    %389 = vmax.xlane.f32.xlu0 %v388
    %v390 = vpop.xlane.xlu0 %389
    %v391 = vsub.f32 %v305, %v387
    %v392 = vsub.f32 %v382, %v390
    %v393 = vmul.f32 %v391, 1.442695
    %v394 = vpow.pop %v393
    %v395 = vmul.f32 %v392, 1.442695
    %v396 = vpow.pop %v395
    %v397 = vsel %vm233, %v394, 0.0
    %398 = vadd.xlane.f32.xlu0 %v397
    %v399 = vpop.xlane.xlu0 %398
    %v400 = vsel %vm233, %v396, 0.0
    %401 = vadd.xlane.f32.xlu0 %v400
    %v402 = vpop.xlane.xlu0 %401
    %v403 = vrcp.pop %v399
    %v404 = vmul.f32 %v394, %v403
    %v405 = vrcp.pop %v402
    %v406 = vmul.f32 %v396, %v405
    %407 = vrot.lane.b32.xlu0 %v222, 64
    %v408 = vpop.permute.xlu0 %407
    %v411 = vsel %vm233, %v404, 0
    %413 = vmatprep.subr.mxu0 0.0
    %414 = vmatpush1.msra.mxu0 %v408
    %415 = vmatprep.subr.mxu0 0.0
    %416 = vmatpush1.msra.mxu0 0.0
    %417 = vmatprep.subr.mxu0 0.0
    %418 = vmatpush1.msra.mxu0 0.0
    %419 = vmatprep.subr.mxu0 0.0
    %420 = vmatpush1.msra.mxu0 0.0
    %421 = vmatprep.subr.mxu0 0.0
    %422 = vmatpush1.msra.mxu0 0.0
    %423 = vmatprep.subr.mxu0 0.0
    %424 = vmatpush1.msra.mxu0 0.0
    %425 = vmatprep.subr.mxu0 0.0
    %426 = vmatpush1.msra.mxu0 0.0
    %427 = vmatprep.subr.mxu0 0.0
    %428 = vmatpush1.msra.mxu0 0.0
    %429 = vmatprep.subr.mxu0 0.0
    %430 = vmatpush1.msra.mxu0 0.0
    %431 = vmatprep.subr.mxu0 0.0
    %432 = vmatpush1.msra.mxu0 0.0
    %433 = vmatprep.subr.mxu0 0.0
    %434 = vmatpush1.msra.mxu0 0.0
    %435 = vmatprep.subr.mxu0 0.0
    %436 = vmatpush1.msra.mxu0 0.0
    %437 = vmatprep.subr.mxu0 0.0
    %438 = vmatpush1.msra.mxu0 0.0
    %439 = vmatprep.subr.mxu0 0.0
    %440 = vmatpush1.msra.mxu0 0.0
    %441 = vmatprep.subr.mxu0 0.0
    %442 = vmatpush1.msra.mxu0 0.0
    %443 = vmatprep.subr.mxu0 0.0
    %444 = vmatpush1.msra.mxu0 0.0
    %445 = vmatprep.subr.mxu0 0.0
    %446 = vmatpush1.msra.mxu0 0.0
    %447 = vmatprep.subr.mxu0 0.0
    %448 = vmatpush1.msra.mxu0 0.0
    %449 = vmatprep.subr.mxu0 0.0
    %450 = vmatpush1.msra.mxu0 0.0
    %451 = vmatprep.subr.mxu0 0.0
    %452 = vmatpush1.msra.mxu0 0.0
    %453 = vmatprep.subr.mxu0 0.0
    %454 = vmatpush1.msra.mxu0 0.0
    %455 = vmatprep.subr.mxu0 0.0
    %456 = vmatpush1.msra.mxu0 0.0
    %457 = vmatprep.subr.mxu0 0.0
    %458 = vmatpush1.msra.mxu0 0.0
    %459 = vmatprep.subr.mxu0 0.0
    %460 = vmatpush1.msra.mxu0 0.0
    %461 = vmatprep.subr.mxu0 0.0
    %462 = vmatpush1.msra.mxu0 0.0
    %463 = vmatprep.subr.mxu0 0.0
    %464 = vmatpush1.msra.mxu0 0.0
    %465 = vmatprep.subr.mxu0 0.0
    %466 = vmatpush1.msra.mxu0 0.0
    %467 = vmatprep.subr.mxu0 0.0
    %468 = vmatpush1.msra.mxu0 0.0
    %469 = vmatprep.subr.mxu0 0.0
    %470 = vmatpush1.msra.mxu0 0.0
    %471 = vmatprep.subr.mxu0 0.0
    %472 = vmatpush1.msra.mxu0 0.0
    %473 = vmatprep.subr.mxu0 0.0
    %474 = vmatpush1.msra.mxu0 0.0
    %475 = vmatprep.subr.mxu0 0.0
    %476 = vmatpush1.msra.mxu0 0.0
    %477 = vmatprep.mubr.f32.mxu0 0.0
    %478 = vmatmul.mubr.f32.gmra.mrb[0].mxu0 %v411
    %v479 = vpop.f32.mrb[0].mxu0
    %v480 = vadd.f32 0.0, %v479
    %v481 = vpop.f32.mrb[0].mxu0
    %482 = vdwg.mxu0
    %483 = vrot.lane.b32.xlu0 %v227, 64
    %v484 = vpop.permute.xlu0 %483
    %v487 = vsel %vm233, %v406, 0
    %489 = vmatprep.subr.mxu0 0.0
    %490 = vmatpush1.msra.mxu0 %v484
    %491 = vmatprep.subr.mxu0 0.0
    %492 = vmatpush1.msra.mxu0 0.0
    %493 = vmatprep.subr.mxu0 0.0
    %494 = vmatpush1.msra.mxu0 0.0
    %495 = vmatprep.subr.mxu0 0.0
    %496 = vmatpush1.msra.mxu0 0.0
    %497 = vmatprep.subr.mxu0 0.0
    %498 = vmatpush1.msra.mxu0 0.0
    %499 = vmatprep.subr.mxu0 0.0
    %500 = vmatpush1.msra.mxu0 0.0
    %501 = vmatprep.subr.mxu0 0.0
    %502 = vmatpush1.msra.mxu0 0.0
    %503 = vmatprep.subr.mxu0 0.0
    %504 = vmatpush1.msra.mxu0 0.0
    %505 = vmatprep.subr.mxu0 0.0
    %506 = vmatpush1.msra.mxu0 0.0
    %507 = vmatprep.subr.mxu0 0.0
    %508 = vmatpush1.msra.mxu0 0.0
    %509 = vmatprep.subr.mxu0 0.0
    %510 = vmatpush1.msra.mxu0 0.0
    %511 = vmatprep.subr.mxu0 0.0
    %512 = vmatpush1.msra.mxu0 0.0
    %513 = vmatprep.subr.mxu0 0.0
    %514 = vmatpush1.msra.mxu0 0.0
    %515 = vmatprep.subr.mxu0 0.0
    %516 = vmatpush1.msra.mxu0 0.0
    %517 = vmatprep.subr.mxu0 0.0
    %518 = vmatpush1.msra.mxu0 0.0
    %519 = vmatprep.subr.mxu0 0.0
    %520 = vmatpush1.msra.mxu0 0.0
    %521 = vmatprep.subr.mxu0 0.0
    %522 = vmatpush1.msra.mxu0 0.0
    %523 = vmatprep.subr.mxu0 0.0
    %524 = vmatpush1.msra.mxu0 0.0
    %525 = vmatprep.subr.mxu0 0.0
    %526 = vmatpush1.msra.mxu0 0.0
    %527 = vmatprep.subr.mxu0 0.0
    %528 = vmatpush1.msra.mxu0 0.0
    %529 = vmatprep.subr.mxu0 0.0
    %530 = vmatpush1.msra.mxu0 0.0
    %531 = vmatprep.subr.mxu0 0.0
    %532 = vmatpush1.msra.mxu0 0.0
    %533 = vmatprep.subr.mxu0 0.0
    %534 = vmatpush1.msra.mxu0 0.0
    %535 = vmatprep.subr.mxu0 0.0
    %536 = vmatpush1.msra.mxu0 0.0
    %537 = vmatprep.subr.mxu0 0.0
    %538 = vmatpush1.msra.mxu0 0.0
    %539 = vmatprep.subr.mxu0 0.0
    %540 = vmatpush1.msra.mxu0 0.0
    %541 = vmatprep.subr.mxu0 0.0
    %542 = vmatpush1.msra.mxu0 0.0
    %543 = vmatprep.subr.mxu0 0.0
    %544 = vmatpush1.msra.mxu0 0.0
    %545 = vmatprep.subr.mxu0 0.0
    %546 = vmatpush1.msra.mxu0 0.0
    %547 = vmatprep.subr.mxu0 0.0
    %548 = vmatpush1.msra.mxu0 0.0
    %549 = vmatprep.subr.mxu0 0.0
    %550 = vmatpush1.msra.mxu0 0.0
    %551 = vmatprep.subr.mxu0 0.0
    %552 = vmatpush1.msra.mxu0 0.0
    %553 = vmatprep.mubr.f32.mxu0 0.0
    %554 = vmatmul.mubr.f32.gmra.mrb[0].mxu0 %v487
    %v555 = vpop.f32.mrb[0].mxu0
    %v556 = vadd.f32 0.0, %v555
    %v557 = vpop.f32.mrb[0].mxu0
    %558 = vdwg.mxu0
    %559 = vrot.lane.b32.xlu0 %v222, 120
    %v560 = vpop.permute.xlu0 %559
    %561 = vrot.lane.b32.xlu0 %v222, 88
    %v562 = vpop.permute.xlu0 %561
    %v563 = vsel %vm233, %v560, 0
    %v565 = vsel %vm233, %v562, 0
    %567 = vmatprep.subr.mxu0 0.0
    %568 = vmatpush1.xpose.msra.mxu0 %v565
    %569 = vmatprep.subr.mxu0 0.0
    %570 = vmatpush1.xpose.msra.mxu0 0.0
    %571 = vmatprep.subr.mxu0 0.0
    %572 = vmatpush1.xpose.msra.mxu0 0.0
    %573 = vmatprep.subr.mxu0 0.0
    %574 = vmatpush1.xpose.msra.mxu0 0.0
    %575 = vmatprep.subr.mxu0 0.0
    %576 = vmatpush1.xpose.msra.mxu0 0.0
    %577 = vmatprep.subr.mxu0 0.0
    %578 = vmatpush1.xpose.msra.mxu0 0.0
    %579 = vmatprep.subr.mxu0 0.0
    %580 = vmatpush1.xpose.msra.mxu0 0.0
    %581 = vmatprep.subr.mxu0 0.0
    %582 = vmatpush1.xpose.msra.mxu0 0.0
    %583 = vmatprep.subr.mxu0 0.0
    %584 = vmatpush1.xpose.msra.mxu0 0.0
    %585 = vmatprep.subr.mxu0 0.0
    %586 = vmatpush1.xpose.msra.mxu0 0.0
    %587 = vmatprep.subr.mxu0 0.0
    %588 = vmatpush1.xpose.msra.mxu0 0.0
    %589 = vmatprep.subr.mxu0 0.0
    %590 = vmatpush1.xpose.msra.mxu0 0.0
    %591 = vmatprep.subr.mxu0 0.0
    %592 = vmatpush1.xpose.msra.mxu0 0.0
    %593 = vmatprep.subr.mxu0 0.0
    %594 = vmatpush1.xpose.msra.mxu0 0.0
    %595 = vmatprep.subr.mxu0 0.0
    %596 = vmatpush1.xpose.msra.mxu0 0.0
    %597 = vmatprep.subr.mxu0 0.0
    %598 = vmatpush1.xpose.msra.mxu0 0.0
    %599 = vmatprep.subr.mxu0 0.0
    %600 = vmatpush1.xpose.msra.mxu0 0.0
    %601 = vmatprep.subr.mxu0 0.0
    %602 = vmatpush1.xpose.msra.mxu0 0.0
    %603 = vmatprep.subr.mxu0 0.0
    %604 = vmatpush1.xpose.msra.mxu0 0.0
    %605 = vmatprep.subr.mxu0 0.0
    %606 = vmatpush1.xpose.msra.mxu0 0.0
    %607 = vmatprep.subr.mxu0 0.0
    %608 = vmatpush1.xpose.msra.mxu0 0.0
    %609 = vmatprep.subr.mxu0 0.0
    %610 = vmatpush1.xpose.msra.mxu0 0.0
    %611 = vmatprep.subr.mxu0 0.0
    %612 = vmatpush1.xpose.msra.mxu0 0.0
    %613 = vmatprep.subr.mxu0 0.0
    %614 = vmatpush1.xpose.msra.mxu0 0.0
    %615 = vmatprep.subr.mxu0 0.0
    %616 = vmatpush1.xpose.msra.mxu0 0.0
    %617 = vmatprep.subr.mxu0 0.0
    %618 = vmatpush1.xpose.msra.mxu0 0.0
    %619 = vmatprep.subr.mxu0 0.0
    %620 = vmatpush1.xpose.msra.mxu0 0.0
    %621 = vmatprep.subr.mxu0 0.0
    %622 = vmatpush1.xpose.msra.mxu0 0.0
    %623 = vmatprep.subr.mxu0 0.0
    %624 = vmatpush1.xpose.msra.mxu0 0.0
    %625 = vmatprep.subr.mxu0 0.0
    %626 = vmatpush1.xpose.msra.mxu0 0.0
    %627 = vmatprep.subr.mxu0 0.0
    %628 = vmatpush1.xpose.msra.mxu0 0.0
    %629 = vmatprep.subr.mxu0 0.0
    %630 = vmatpush1.xpose.msra.mxu0 0.0
    %631 = vmatprep.mubr.f32.mxu0 0.0
    %632 = vmatmul.mubr.f32.gmra.mrb[0].mxu0 %v563
    %v633 = vpop.f32.mrb[0].mxu0
    %v634 = vadd.f32 0.0, %v633
    %v635 = vpop.f32.mrb[0].mxu0
    %636 = vdwg.mxu0
    %637 = vrot.lane.b32.xlu0 %v227, 120
    %v638 = vpop.permute.xlu0 %637
    %639 = vrot.lane.b32.xlu0 %v227, 88
    %v640 = vpop.permute.xlu0 %639
    %v641 = vsel %vm233, %v638, 0
    %v643 = vsel %vm233, %v640, 0
    %645 = vmatprep.subr.mxu0 0.0
    %646 = vmatpush1.xpose.msra.mxu0 %v643
    %647 = vmatprep.subr.mxu0 0.0
    %648 = vmatpush1.xpose.msra.mxu0 0.0
    %649 = vmatprep.subr.mxu0 0.0
    %650 = vmatpush1.xpose.msra.mxu0 0.0
    %651 = vmatprep.subr.mxu0 0.0
    %652 = vmatpush1.xpose.msra.mxu0 0.0
    %653 = vmatprep.subr.mxu0 0.0
    %654 = vmatpush1.xpose.msra.mxu0 0.0
    %655 = vmatprep.subr.mxu0 0.0
    %656 = vmatpush1.xpose.msra.mxu0 0.0
    %657 = vmatprep.subr.mxu0 0.0
    %658 = vmatpush1.xpose.msra.mxu0 0.0
    %659 = vmatprep.subr.mxu0 0.0
    %660 = vmatpush1.xpose.msra.mxu0 0.0
    %661 = vmatprep.subr.mxu0 0.0
    %662 = vmatpush1.xpose.msra.mxu0 0.0
    %663 = vmatprep.subr.mxu0 0.0
    %664 = vmatpush1.xpose.msra.mxu0 0.0
    %665 = vmatprep.subr.mxu0 0.0
    %666 = vmatpush1.xpose.msra.mxu0 0.0
    %667 = vmatprep.subr.mxu0 0.0
    %668 = vmatpush1.xpose.msra.mxu0 0.0
    %669 = vmatprep.subr.mxu0 0.0
    %670 = vmatpush1.xpose.msra.mxu0 0.0
    %671 = vmatprep.subr.mxu0 0.0
    %672 = vmatpush1.xpose.msra.mxu0 0.0
    %673 = vmatprep.subr.mxu0 0.0
    %674 = vmatpush1.xpose.msra.mxu0 0.0
    %675 = vmatprep.subr.mxu0 0.0
    %676 = vmatpush1.xpose.msra.mxu0 0.0
    %677 = vmatprep.subr.mxu0 0.0
    %678 = vmatpush1.xpose.msra.mxu0 0.0
    %679 = vmatprep.subr.mxu0 0.0
    %680 = vmatpush1.xpose.msra.mxu0 0.0
    %681 = vmatprep.subr.mxu0 0.0
    %682 = vmatpush1.xpose.msra.mxu0 0.0
    %683 = vmatprep.subr.mxu0 0.0
    %684 = vmatpush1.xpose.msra.mxu0 0.0
    %685 = vmatprep.subr.mxu0 0.0
    %686 = vmatpush1.xpose.msra.mxu0 0.0
    %687 = vmatprep.subr.mxu0 0.0
    %688 = vmatpush1.xpose.msra.mxu0 0.0
    %689 = vmatprep.subr.mxu0 0.0
    %690 = vmatpush1.xpose.msra.mxu0 0.0
    %691 = vmatprep.subr.mxu0 0.0
    %692 = vmatpush1.xpose.msra.mxu0 0.0
    %693 = vmatprep.subr.mxu0 0.0
    %694 = vmatpush1.xpose.msra.mxu0 0.0
    %695 = vmatprep.subr.mxu0 0.0
    %696 = vmatpush1.xpose.msra.mxu0 0.0
    %697 = vmatprep.subr.mxu0 0.0
    %698 = vmatpush1.xpose.msra.mxu0 0.0
    %699 = vmatprep.subr.mxu0 0.0
    %700 = vmatpush1.xpose.msra.mxu0 0.0
    %701 = vmatprep.subr.mxu0 0.0
    %702 = vmatpush1.xpose.msra.mxu0 0.0
    %703 = vmatprep.subr.mxu0 0.0
    %704 = vmatpush1.xpose.msra.mxu0 0.0
    %705 = vmatprep.subr.mxu0 0.0
    %706 = vmatpush1.xpose.msra.mxu0 0.0
    %707 = vmatprep.subr.mxu0 0.0
    %708 = vmatpush1.xpose.msra.mxu0 0.0
    %709 = vmatprep.mubr.f32.mxu0 0.0
    %710 = vmatmul.mubr.f32.gmra.mrb[0].mxu0 %v641
    %v711 = vpop.f32.mrb[0].mxu0
    %v712 = vadd.f32 0.0, %v711
    %v713 = vpop.f32.mrb[0].mxu0
    %714 = vdwg.mxu0
    %v715 = vsel %vm233, %v634, -inf
    %716 = vmax.xlane.f32.xlu0 %v715
    %v717 = vpop.xlane.xlu0 %716
    %v718 = vsel %vm233, %v712, -inf
    %719 = vmax.xlane.f32.xlu0 %v718
    %v720 = vpop.xlane.xlu0 %719
    %v721 = vsub.f32 %v634, %v717
    %v722 = vsub.f32 %v712, %v720
    %v723 = vmul.f32 %v721, 1.442695
    %v724 = vpow.pop %v723
    %v725 = vmul.f32 %v722, 1.442695
    %v726 = vpow.pop %v725
    %v727 = vsel %vm233, %v724, 0.0
    %728 = vadd.xlane.f32.xlu0 %v727
    %v729 = vpop.xlane.xlu0 %728
    %v730 = vsel %vm233, %v726, 0.0
    %731 = vadd.xlane.f32.xlu0 %v730
    %v732 = vpop.xlane.xlu0 %731
    %v733 = vrcp.pop %v729
    %v734 = vmul.f32 %v724, %v733
    %v735 = vrcp.pop %v732
    %v736 = vmul.f32 %v726, %v735
    %737 = vrot.lane.b32.xlu0 %v222, 56
    %v738 = vpop.permute.xlu0 %737
    %v741 = vsel %vm233, %v734, 0
    %743 = vmatprep.subr.mxu0 0.0
    %744 = vmatpush1.msra.mxu0 %v738
    %745 = vmatprep.subr.mxu0 0.0
    %746 = vmatpush1.msra.mxu0 0.0
    %747 = vmatprep.subr.mxu0 0.0
    %748 = vmatpush1.msra.mxu0 0.0
    %749 = vmatprep.subr.mxu0 0.0
    %750 = vmatpush1.msra.mxu0 0.0
    %751 = vmatprep.subr.mxu0 0.0
    %752 = vmatpush1.msra.mxu0 0.0
    %753 = vmatprep.subr.mxu0 0.0
    %754 = vmatpush1.msra.mxu0 0.0
    %755 = vmatprep.subr.mxu0 0.0
    %756 = vmatpush1.msra.mxu0 0.0
    %757 = vmatprep.subr.mxu0 0.0
    %758 = vmatpush1.msra.mxu0 0.0
    %759 = vmatprep.subr.mxu0 0.0
    %760 = vmatpush1.msra.mxu0 0.0
    %761 = vmatprep.subr.mxu0 0.0
    %762 = vmatpush1.msra.mxu0 0.0
    %763 = vmatprep.subr.mxu0 0.0
    %764 = vmatpush1.msra.mxu0 0.0
    %765 = vmatprep.subr.mxu0 0.0
    %766 = vmatpush1.msra.mxu0 0.0
    %767 = vmatprep.subr.mxu0 0.0
    %768 = vmatpush1.msra.mxu0 0.0
    %769 = vmatprep.subr.mxu0 0.0
    %770 = vmatpush1.msra.mxu0 0.0
    %771 = vmatprep.subr.mxu0 0.0
    %772 = vmatpush1.msra.mxu0 0.0
    %773 = vmatprep.subr.mxu0 0.0
    %774 = vmatpush1.msra.mxu0 0.0
    %775 = vmatprep.subr.mxu0 0.0
    %776 = vmatpush1.msra.mxu0 0.0
    %777 = vmatprep.subr.mxu0 0.0
    %778 = vmatpush1.msra.mxu0 0.0
    %779 = vmatprep.subr.mxu0 0.0
    %780 = vmatpush1.msra.mxu0 0.0
    %781 = vmatprep.subr.mxu0 0.0
    %782 = vmatpush1.msra.mxu0 0.0
    %783 = vmatprep.subr.mxu0 0.0
    %784 = vmatpush1.msra.mxu0 0.0
    %785 = vmatprep.subr.mxu0 0.0
    %786 = vmatpush1.msra.mxu0 0.0
    %787 = vmatprep.subr.mxu0 0.0
    %788 = vmatpush1.msra.mxu0 0.0
    %789 = vmatprep.subr.mxu0 0.0
    %790 = vmatpush1.msra.mxu0 0.0
    %791 = vmatprep.subr.mxu0 0.0
    %792 = vmatpush1.msra.mxu0 0.0
    %793 = vmatprep.subr.mxu0 0.0
    %794 = vmatpush1.msra.mxu0 0.0
    %795 = vmatprep.subr.mxu0 0.0
    %796 = vmatpush1.msra.mxu0 0.0
    %797 = vmatprep.subr.mxu0 0.0
    %798 = vmatpush1.msra.mxu0 0.0
    %799 = vmatprep.subr.mxu0 0.0
    %800 = vmatpush1.msra.mxu0 0.0
    %801 = vmatprep.subr.mxu0 0.0
    %802 = vmatpush1.msra.mxu0 0.0
    %803 = vmatprep.subr.mxu0 0.0
    %804 = vmatpush1.msra.mxu0 0.0
    %805 = vmatprep.subr.mxu0 0.0
    %806 = vmatpush1.msra.mxu0 0.0
    %807 = vmatprep.mubr.f32.mxu0 0.0
    %808 = vmatmul.mubr.f32.gmra.mrb[0].mxu0 %v741
    %v809 = vpop.f32.mrb[0].mxu0
    %v810 = vadd.f32 0.0, %v809
    %v811 = vpop.f32.mrb[0].mxu0
    %812 = vdwg.mxu0
    %813 = vrot.lane.b32.xlu0 %v227, 56
    %v814 = vpop.permute.xlu0 %813
    %v817 = vsel %vm233, %v736, 0
    %819 = vmatprep.subr.mxu0 0.0
    %820 = vmatpush1.msra.mxu0 %v814
    %821 = vmatprep.subr.mxu0 0.0
    %822 = vmatpush1.msra.mxu0 0.0
    %823 = vmatprep.subr.mxu0 0.0
    %824 = vmatpush1.msra.mxu0 0.0
    %825 = vmatprep.subr.mxu0 0.0
    %826 = vmatpush1.msra.mxu0 0.0
    %827 = vmatprep.subr.mxu0 0.0
    %828 = vmatpush1.msra.mxu0 0.0
    %829 = vmatprep.subr.mxu0 0.0
    %830 = vmatpush1.msra.mxu0 0.0
    %831 = vmatprep.subr.mxu0 0.0
    %832 = vmatpush1.msra.mxu0 0.0
    %833 = vmatprep.subr.mxu0 0.0
    %834 = vmatpush1.msra.mxu0 0.0
    %835 = vmatprep.subr.mxu0 0.0
    %836 = vmatpush1.msra.mxu0 0.0
    %837 = vmatprep.subr.mxu0 0.0
    %838 = vmatpush1.msra.mxu0 0.0
    %839 = vmatprep.subr.mxu0 0.0
    %840 = vmatpush1.msra.mxu0 0.0
    %841 = vmatprep.subr.mxu0 0.0
    %842 = vmatpush1.msra.mxu0 0.0
    %843 = vmatprep.subr.mxu0 0.0
    %844 = vmatpush1.msra.mxu0 0.0
    %845 = vmatprep.subr.mxu0 0.0
    %846 = vmatpush1.msra.mxu0 0.0
    %847 = vmatprep.subr.mxu0 0.0
    %848 = vmatpush1.msra.mxu0 0.0
    %849 = vmatprep.subr.mxu0 0.0
    %850 = vmatpush1.msra.mxu0 0.0
    %851 = vmatprep.subr.mxu0 0.0
    %852 = vmatpush1.msra.mxu0 0.0
    %853 = vmatprep.subr.mxu0 0.0
    %854 = vmatpush1.msra.mxu0 0.0
    %855 = vmatprep.subr.mxu0 0.0
    %856 = vmatpush1.msra.mxu0 0.0
    %857 = vmatprep.subr.mxu0 0.0
    %858 = vmatpush1.msra.mxu0 0.0
    %859 = vmatprep.subr.mxu0 0.0
    %860 = vmatpush1.msra.mxu0 0.0
    %861 = vmatprep.subr.mxu0 0.0
    %862 = vmatpush1.msra.mxu0 0.0
    %863 = vmatprep.subr.mxu0 0.0
    %864 = vmatpush1.msra.mxu0 0.0
    %865 = vmatprep.subr.mxu0 0.0
    %866 = vmatpush1.msra.mxu0 0.0
    %867 = vmatprep.subr.mxu0 0.0
    %868 = vmatpush1.msra.mxu0 0.0
    %869 = vmatprep.subr.mxu0 0.0
    %870 = vmatpush1.msra.mxu0 0.0
    %871 = vmatprep.subr.mxu0 0.0
    %872 = vmatpush1.msra.mxu0 0.0
    %873 = vmatprep.subr.mxu0 0.0
    %874 = vmatpush1.msra.mxu0 0.0
    %875 = vmatprep.subr.mxu0 0.0
    %876 = vmatpush1.msra.mxu0 0.0
    %877 = vmatprep.subr.mxu0 0.0
    %878 = vmatpush1.msra.mxu0 0.0
    %879 = vmatprep.subr.mxu0 0.0
    %880 = vmatpush1.msra.mxu0 0.0
    %881 = vmatprep.subr.mxu0 0.0
    %882 = vmatpush1.msra.mxu0 0.0
    %883 = vmatprep.mubr.f32.mxu0 0.0
    %884 = vmatmul.mubr.f32.gmra.mrb[0].mxu0 %v817
    %v885 = vpop.f32.mrb[0].mxu0
    %v886 = vadd.f32 0.0, %v885
    %v887 = vpop.f32.mrb[0].mxu0
    %888 = vdwg.mxu0
    %889 = vrot.lane.b32.xlu0 %v222, 112
    %v890 = vpop.permute.xlu0 %889
    %891 = vrot.lane.b32.xlu0 %v222, 80
    %v892 = vpop.permute.xlu0 %891
    %v893 = vsel %vm233, %v890, 0
    %v895 = vsel %vm233, %v892, 0
    %897 = vmatprep.subr.mxu0 0.0
    %898 = vmatpush1.xpose.msra.mxu0 %v895
    %899 = vmatprep.subr.mxu0 0.0
    %900 = vmatpush1.xpose.msra.mxu0 0.0
    %901 = vmatprep.subr.mxu0 0.0
    %902 = vmatpush1.xpose.msra.mxu0 0.0
    %903 = vmatprep.subr.mxu0 0.0
    %904 = vmatpush1.xpose.msra.mxu0 0.0
    %905 = vmatprep.subr.mxu0 0.0
    %906 = vmatpush1.xpose.msra.mxu0 0.0
    %907 = vmatprep.subr.mxu0 0.0
    %908 = vmatpush1.xpose.msra.mxu0 0.0
    %909 = vmatprep.subr.mxu0 0.0
    %910 = vmatpush1.xpose.msra.mxu0 0.0
    %911 = vmatprep.subr.mxu0 0.0
    %912 = vmatpush1.xpose.msra.mxu0 0.0
    %913 = vmatprep.subr.mxu0 0.0
    %914 = vmatpush1.xpose.msra.mxu0 0.0
    %915 = vmatprep.subr.mxu0 0.0
    %916 = vmatpush1.xpose.msra.mxu0 0.0
    %917 = vmatprep.subr.mxu0 0.0
    %918 = vmatpush1.xpose.msra.mxu0 0.0
    %919 = vmatprep.subr.mxu0 0.0
    %920 = vmatpush1.xpose.msra.mxu0 0.0
    %921 = vmatprep.subr.mxu0 0.0
    %922 = vmatpush1.xpose.msra.mxu0 0.0
    %923 = vmatprep.subr.mxu0 0.0
    %924 = vmatpush1.xpose.msra.mxu0 0.0
    %925 = vmatprep.subr.mxu0 0.0
    %926 = vmatpush1.xpose.msra.mxu0 0.0
    %927 = vmatprep.subr.mxu0 0.0
    %928 = vmatpush1.xpose.msra.mxu0 0.0
    %929 = vmatprep.subr.mxu0 0.0
    %930 = vmatpush1.xpose.msra.mxu0 0.0
    %931 = vmatprep.subr.mxu0 0.0
    %932 = vmatpush1.xpose.msra.mxu0 0.0
    %933 = vmatprep.subr.mxu0 0.0
    %934 = vmatpush1.xpose.msra.mxu0 0.0
    %935 = vmatprep.subr.mxu0 0.0
    %936 = vmatpush1.xpose.msra.mxu0 0.0
    %937 = vmatprep.subr.mxu0 0.0
    %938 = vmatpush1.xpose.msra.mxu0 0.0
    %939 = vmatprep.subr.mxu0 0.0
    %940 = vmatpush1.xpose.msra.mxu0 0.0
    %941 = vmatprep.subr.mxu0 0.0
    %942 = vmatpush1.xpose.msra.mxu0 0.0
    %943 = vmatprep.subr.mxu0 0.0
    %944 = vmatpush1.xpose.msra.mxu0 0.0
    %945 = vmatprep.subr.mxu0 0.0
    %946 = vmatpush1.xpose.msra.mxu0 0.0
    %947 = vmatprep.subr.mxu0 0.0
    %948 = vmatpush1.xpose.msra.mxu0 0.0
    %949 = vmatprep.subr.mxu0 0.0
    %950 = vmatpush1.xpose.msra.mxu0 0.0
    %951 = vmatprep.subr.mxu0 0.0
    %952 = vmatpush1.xpose.msra.mxu0 0.0
    %953 = vmatprep.subr.mxu0 0.0
    %954 = vmatpush1.xpose.msra.mxu0 0.0
    %955 = vmatprep.subr.mxu0 0.0
    %956 = vmatpush1.xpose.msra.mxu0 0.0
    %957 = vmatprep.subr.mxu0 0.0
    %958 = vmatpush1.xpose.msra.mxu0 0.0
    %959 = vmatprep.subr.mxu0 0.0
    %960 = vmatpush1.xpose.msra.mxu0 0.0
    %961 = vmatprep.mubr.f32.mxu0 0.0
    %962 = vmatmul.mubr.f32.gmra.mrb[0].mxu0 %v893
    %v963 = vpop.f32.mrb[0].mxu0
    %v964 = vadd.f32 0.0, %v963
    %v965 = vpop.f32.mrb[0].mxu0
    %966 = vdwg.mxu0
    %967 = vrot.lane.b32.xlu0 %v227, 112
    %v968 = vpop.permute.xlu0 %967
    %969 = vrot.lane.b32.xlu0 %v227, 80
    %v970 = vpop.permute.xlu0 %969
    %v971 = vsel %vm233, %v968, 0
    %v973 = vsel %vm233, %v970, 0
    %975 = vmatprep.subr.mxu0 0.0
    %976 = vmatpush1.xpose.msra.mxu0 %v973
    %977 = vmatprep.subr.mxu0 0.0
    %978 = vmatpush1.xpose.msra.mxu0 0.0
    %979 = vmatprep.subr.mxu0 0.0
    %980 = vmatpush1.xpose.msra.mxu0 0.0
    %981 = vmatprep.subr.mxu0 0.0
    %982 = vmatpush1.xpose.msra.mxu0 0.0
    %983 = vmatprep.subr.mxu0 0.0
    %984 = vmatpush1.xpose.msra.mxu0 0.0
    %985 = vmatprep.subr.mxu0 0.0
    %986 = vmatpush1.xpose.msra.mxu0 0.0
    %987 = vmatprep.subr.mxu0 0.0
    %988 = vmatpush1.xpose.msra.mxu0 0.0
    %989 = vmatprep.subr.mxu0 0.0
    %990 = vmatpush1.xpose.msra.mxu0 0.0
    %991 = vmatprep.subr.mxu0 0.0
    %992 = vmatpush1.xpose.msra.mxu0 0.0
    %993 = vmatprep.subr.mxu0 0.0
    %994 = vmatpush1.xpose.msra.mxu0 0.0
    %995 = vmatprep.subr.mxu0 0.0
    %996 = vmatpush1.xpose.msra.mxu0 0.0
    %997 = vmatprep.subr.mxu0 0.0
    %998 = vmatpush1.xpose.msra.mxu0 0.0
    %999 = vmatprep.subr.mxu0 0.0
    %1000 = vmatpush1.xpose.msra.mxu0 0.0
    %1001 = vmatprep.subr.mxu0 0.0
    %1002 = vmatpush1.xpose.msra.mxu0 0.0
    %1003 = vmatprep.subr.mxu0 0.0
    %1004 = vmatpush1.xpose.msra.mxu0 0.0
    %1005 = vmatprep.subr.mxu0 0.0
    %1006 = vmatpush1.xpose.msra.mxu0 0.0
    %1007 = vmatprep.subr.mxu0 0.0
    %1008 = vmatpush1.xpose.msra.mxu0 0.0
    %1009 = vmatprep.subr.mxu0 0.0
    %1010 = vmatpush1.xpose.msra.mxu0 0.0
    %1011 = vmatprep.subr.mxu0 0.0
    %1012 = vmatpush1.xpose.msra.mxu0 0.0
    %1013 = vmatprep.subr.mxu0 0.0
    %1014 = vmatpush1.xpose.msra.mxu0 0.0
    %1015 = vmatprep.subr.mxu0 0.0
    %1016 = vmatpush1.xpose.msra.mxu0 0.0
    %1017 = vmatprep.subr.mxu0 0.0
    %1018 = vmatpush1.xpose.msra.mxu0 0.0
    %1019 = vmatprep.subr.mxu0 0.0
    %1020 = vmatpush1.xpose.msra.mxu0 0.0
    %1021 = vmatprep.subr.mxu0 0.0
    %1022 = vmatpush1.xpose.msra.mxu0 0.0
    %1023 = vmatprep.subr.mxu0 0.0
    %1024 = vmatpush1.xpose.msra.mxu0 0.0
    %1025 = vmatprep.subr.mxu0 0.0
    %1026 = vmatpush1.xpose.msra.mxu0 0.0
    %1027 = vmatprep.subr.mxu0 0.0
    %1028 = vmatpush1.xpose.msra.mxu0 0.0
    %1029 = vmatprep.subr.mxu0 0.0
    %1030 = vmatpush1.xpose.msra.mxu0 0.0
    %1031 = vmatprep.subr.mxu0 0.0
    %1032 = vmatpush1.xpose.msra.mxu0 0.0
    %1033 = vmatprep.subr.mxu0 0.0
    %1034 = vmatpush1.xpose.msra.mxu0 0.0
    %1035 = vmatprep.subr.mxu0 0.0
    %1036 = vmatpush1.xpose.msra.mxu0 0.0
    %1037 = vmatprep.subr.mxu0 0.0
    %1038 = vmatpush1.xpose.msra.mxu0 0.0
    %1039 = vmatprep.mubr.f32.mxu0 0.0
    %1040 = vmatmul.mubr.f32.gmra.mrb[0].mxu0 %v971
    %v1041 = vpop.f32.mrb[0].mxu0
    %v1042 = vadd.f32 0.0, %v1041
    %v1043 = vpop.f32.mrb[0].mxu0
    %1044 = vdwg.mxu0
    %v1045 = vsel %vm233, %v964, -inf
    %1046 = vmax.xlane.f32.xlu0 %v1045
    %v1047 = vpop.xlane.xlu0 %1046
    %v1048 = vsel %vm233, %v1042, -inf
    %1049 = vmax.xlane.f32.xlu0 %v1048
    %v1050 = vpop.xlane.xlu0 %1049
    %v1051 = vsub.f32 %v964, %v1047
    %v1052 = vsub.f32 %v1042, %v1050
    %v1053 = vmul.f32 %v1051, 1.442695
    %v1054 = vpow.pop %v1053
    %v1055 = vmul.f32 %v1052, 1.442695
    %v1056 = vpow.pop %v1055
    %v1057 = vsel %vm233, %v1054, 0.0
    %1058 = vadd.xlane.f32.xlu0 %v1057
    %v1059 = vpop.xlane.xlu0 %1058
    %v1060 = vsel %vm233, %v1056, 0.0
    %1061 = vadd.xlane.f32.xlu0 %v1060
    %v1062 = vpop.xlane.xlu0 %1061
    %v1063 = vrcp.pop %v1059
    %v1064 = vmul.f32 %v1054, %v1063
    %v1065 = vrcp.pop %v1062
    %v1066 = vmul.f32 %v1056, %v1065
    %1067 = vrot.lane.b32.xlu0 %v222, 48
    %v1068 = vpop.permute.xlu0 %1067
    %v1071 = vsel %vm233, %v1064, 0
    %1073 = vmatprep.subr.mxu0 0.0
    %1074 = vmatpush1.msra.mxu0 %v1068
    %1075 = vmatprep.subr.mxu0 0.0
    %1076 = vmatpush1.msra.mxu0 0.0
    %1077 = vmatprep.subr.mxu0 0.0
    %1078 = vmatpush1.msra.mxu0 0.0
    %1079 = vmatprep.subr.mxu0 0.0
    %1080 = vmatpush1.msra.mxu0 0.0
    %1081 = vmatprep.subr.mxu0 0.0
    %1082 = vmatpush1.msra.mxu0 0.0
    %1083 = vmatprep.subr.mxu0 0.0
    %1084 = vmatpush1.msra.mxu0 0.0
    %1085 = vmatprep.subr.mxu0 0.0
    %1086 = vmatpush1.msra.mxu0 0.0
    %1087 = vmatprep.subr.mxu0 0.0
    %1088 = vmatpush1.msra.mxu0 0.0
    %1089 = vmatprep.subr.mxu0 0.0
    %1090 = vmatpush1.msra.mxu0 0.0
    %1091 = vmatprep.subr.mxu0 0.0
    %1092 = vmatpush1.msra.mxu0 0.0
    %1093 = vmatprep.subr.mxu0 0.0
    %1094 = vmatpush1.msra.mxu0 0.0
    %1095 = vmatprep.subr.mxu0 0.0
    %1096 = vmatpush1.msra.mxu0 0.0
    %1097 = vmatprep.subr.mxu0 0.0
    %1098 = vmatpush1.msra.mxu0 0.0
    %1099 = vmatprep.subr.mxu0 0.0
    %1100 = vmatpush1.msra.mxu0 0.0
    %1101 = vmatprep.subr.mxu0 0.0
    %1102 = vmatpush1.msra.mxu0 0.0
    %1103 = vmatprep.subr.mxu0 0.0
    %1104 = vmatpush1.msra.mxu0 0.0
    %1105 = vmatprep.subr.mxu0 0.0
    %1106 = vmatpush1.msra.mxu0 0.0
    %1107 = vmatprep.subr.mxu0 0.0
    %1108 = vmatpush1.msra.mxu0 0.0
    %1109 = vmatprep.subr.mxu0 0.0
    %1110 = vmatpush1.msra.mxu0 0.0
    %1111 = vmatprep.subr.mxu0 0.0
    %1112 = vmatpush1.msra.mxu0 0.0
    %1113 = vmatprep.subr.mxu0 0.0
    %1114 = vmatpush1.msra.mxu0 0.0
    %1115 = vmatprep.subr.mxu0 0.0
    %1116 = vmatpush1.msra.mxu0 0.0
    %1117 = vmatprep.subr.mxu0 0.0
    %1118 = vmatpush1.msra.mxu0 0.0
    %1119 = vmatprep.subr.mxu0 0.0
    %1120 = vmatpush1.msra.mxu0 0.0
    %1121 = vmatprep.subr.mxu0 0.0
    %1122 = vmatpush1.msra.mxu0 0.0
    %1123 = vmatprep.subr.mxu0 0.0
    %1124 = vmatpush1.msra.mxu0 0.0
    %1125 = vmatprep.subr.mxu0 0.0
    %1126 = vmatpush1.msra.mxu0 0.0
    %1127 = vmatprep.subr.mxu0 0.0
    %1128 = vmatpush1.msra.mxu0 0.0
    %1129 = vmatprep.subr.mxu0 0.0
    %1130 = vmatpush1.msra.mxu0 0.0
    %1131 = vmatprep.subr.mxu0 0.0
    %1132 = vmatpush1.msra.mxu0 0.0
    %1133 = vmatprep.subr.mxu0 0.0
    %1134 = vmatpush1.msra.mxu0 0.0
    %1135 = vmatprep.subr.mxu0 0.0
    %1136 = vmatpush1.msra.mxu0 0.0
    %1137 = vmatprep.mubr.f32.mxu0 0.0
    %1138 = vmatmul.mubr.f32.gmra.mrb[0].mxu0 %v1071
    %v1139 = vpop.f32.mrb[0].mxu0
    %v1140 = vadd.f32 0.0, %v1139
    %v1141 = vpop.f32.mrb[0].mxu0
    %1142 = vdwg.mxu0
    %1143 = vrot.lane.b32.xlu0 %v227, 48
    %v1144 = vpop.permute.xlu0 %1143
    %v1147 = vsel %vm233, %v1066, 0
    %1149 = vmatprep.subr.mxu0 0.0
    %1150 = vmatpush1.msra.mxu0 %v1144
    %1151 = vmatprep.subr.mxu0 0.0
    %1152 = vmatpush1.msra.mxu0 0.0
    %1153 = vmatprep.subr.mxu0 0.0
    %1154 = vmatpush1.msra.mxu0 0.0
    %1155 = vmatprep.subr.mxu0 0.0
    %1156 = vmatpush1.msra.mxu0 0.0
    %1157 = vmatprep.subr.mxu0 0.0
    %1158 = vmatpush1.msra.mxu0 0.0
    %1159 = vmatprep.subr.mxu0 0.0
    %1160 = vmatpush1.msra.mxu0 0.0
    %1161 = vmatprep.subr.mxu0 0.0
    %1162 = vmatpush1.msra.mxu0 0.0
    %1163 = vmatprep.subr.mxu0 0.0
    %1164 = vmatpush1.msra.mxu0 0.0
    %1165 = vmatprep.subr.mxu0 0.0
    %1166 = vmatpush1.msra.mxu0 0.0
    %1167 = vmatprep.subr.mxu0 0.0
    %1168 = vmatpush1.msra.mxu0 0.0
    %1169 = vmatprep.subr.mxu0 0.0
    %1170 = vmatpush1.msra.mxu0 0.0
    %1171 = vmatprep.subr.mxu0 0.0
    %1172 = vmatpush1.msra.mxu0 0.0
    %1173 = vmatprep.subr.mxu0 0.0
    %1174 = vmatpush1.msra.mxu0 0.0
    %1175 = vmatprep.subr.mxu0 0.0
    %1176 = vmatpush1.msra.mxu0 0.0
    %1177 = vmatprep.subr.mxu0 0.0
    %1178 = vmatpush1.msra.mxu0 0.0
    %1179 = vmatprep.subr.mxu0 0.0
    %1180 = vmatpush1.msra.mxu0 0.0
    %1181 = vmatprep.subr.mxu0 0.0
    %1182 = vmatpush1.msra.mxu0 0.0
    %1183 = vmatprep.subr.mxu0 0.0
    %1184 = vmatpush1.msra.mxu0 0.0
    %1185 = vmatprep.subr.mxu0 0.0
    %1186 = vmatpush1.msra.mxu0 0.0
    %1187 = vmatprep.subr.mxu0 0.0
    %1188 = vmatpush1.msra.mxu0 0.0
    %1189 = vmatprep.subr.mxu0 0.0
    %1190 = vmatpush1.msra.mxu0 0.0
    %1191 = vmatprep.subr.mxu0 0.0
    %1192 = vmatpush1.msra.mxu0 0.0
    %1193 = vmatprep.subr.mxu0 0.0
    %1194 = vmatpush1.msra.mxu0 0.0
    %1195 = vmatprep.subr.mxu0 0.0
    %1196 = vmatpush1.msra.mxu0 0.0
    %1197 = vmatprep.subr.mxu0 0.0
    %1198 = vmatpush1.msra.mxu0 0.0
    %1199 = vmatprep.subr.mxu0 0.0
    %1200 = vmatpush1.msra.mxu0 0.0
    %1201 = vmatprep.subr.mxu0 0.0
    %1202 = vmatpush1.msra.mxu0 0.0
    %1203 = vmatprep.subr.mxu0 0.0
    %1204 = vmatpush1.msra.mxu0 0.0
    %1205 = vmatprep.subr.mxu0 0.0
    %1206 = vmatpush1.msra.mxu0 0.0
    %1207 = vmatprep.subr.mxu0 0.0
    %1208 = vmatpush1.msra.mxu0 0.0
    %1209 = vmatprep.subr.mxu0 0.0
    %1210 = vmatpush1.msra.mxu0 0.0
    %1211 = vmatprep.subr.mxu0 0.0
    %1212 = vmatpush1.msra.mxu0 0.0
    %1213 = vmatprep.mubr.f32.mxu0 0.0
    %1214 = vmatmul.mubr.f32.gmra.mrb[0].mxu0 %v1147
    %v1215 = vpop.f32.mrb[0].mxu0
    %v1216 = vadd.f32 0.0, %v1215
    %v1217 = vpop.f32.mrb[0].mxu0
    %1218 = vdwg.mxu0
    %1219 = vrot.lane.b32.xlu0 %v222, 104
    %v1220 = vpop.permute.xlu0 %1219
    %1221 = vrot.lane.b32.xlu0 %v222, 72
    %v1222 = vpop.permute.xlu0 %1221
    %v1223 = vsel %vm233, %v1220, 0
    %v1225 = vsel %vm233, %v1222, 0
    %1227 = vmatprep.subr.mxu0 0.0
    %1228 = vmatpush1.xpose.msra.mxu0 %v1225
    %1229 = vmatprep.subr.mxu0 0.0
    %1230 = vmatpush1.xpose.msra.mxu0 0.0
    %1231 = vmatprep.subr.mxu0 0.0
    %1232 = vmatpush1.xpose.msra.mxu0 0.0
    %1233 = vmatprep.subr.mxu0 0.0
    %1234 = vmatpush1.xpose.msra.mxu0 0.0
    %1235 = vmatprep.subr.mxu0 0.0
    %1236 = vmatpush1.xpose.msra.mxu0 0.0
    %1237 = vmatprep.subr.mxu0 0.0
    %1238 = vmatpush1.xpose.msra.mxu0 0.0
    %1239 = vmatprep.subr.mxu0 0.0
    %1240 = vmatpush1.xpose.msra.mxu0 0.0
    %1241 = vmatprep.subr.mxu0 0.0
    %1242 = vmatpush1.xpose.msra.mxu0 0.0
    %1243 = vmatprep.subr.mxu0 0.0
    %1244 = vmatpush1.xpose.msra.mxu0 0.0
    %1245 = vmatprep.subr.mxu0 0.0
    %1246 = vmatpush1.xpose.msra.mxu0 0.0
    %1247 = vmatprep.subr.mxu0 0.0
    %1248 = vmatpush1.xpose.msra.mxu0 0.0
    %1249 = vmatprep.subr.mxu0 0.0
    %1250 = vmatpush1.xpose.msra.mxu0 0.0
    %1251 = vmatprep.subr.mxu0 0.0
    %1252 = vmatpush1.xpose.msra.mxu0 0.0
    %1253 = vmatprep.subr.mxu0 0.0
    %1254 = vmatpush1.xpose.msra.mxu0 0.0
    %1255 = vmatprep.subr.mxu0 0.0
    %1256 = vmatpush1.xpose.msra.mxu0 0.0
    %1257 = vmatprep.subr.mxu0 0.0
    %1258 = vmatpush1.xpose.msra.mxu0 0.0
    %1259 = vmatprep.subr.mxu0 0.0
    %1260 = vmatpush1.xpose.msra.mxu0 0.0
    %1261 = vmatprep.subr.mxu0 0.0
    %1262 = vmatpush1.xpose.msra.mxu0 0.0
    %1263 = vmatprep.subr.mxu0 0.0
    %1264 = vmatpush1.xpose.msra.mxu0 0.0
    %1265 = vmatprep.subr.mxu0 0.0
    %1266 = vmatpush1.xpose.msra.mxu0 0.0
    %1267 = vmatprep.subr.mxu0 0.0
    %1268 = vmatpush1.xpose.msra.mxu0 0.0
    %1269 = vmatprep.subr.mxu0 0.0
    %1270 = vmatpush1.xpose.msra.mxu0 0.0
    %1271 = vmatprep.subr.mxu0 0.0
    %1272 = vmatpush1.xpose.msra.mxu0 0.0
    %1273 = vmatprep.subr.mxu0 0.0
    %1274 = vmatpush1.xpose.msra.mxu0 0.0
    %1275 = vmatprep.subr.mxu0 0.0
    %1276 = vmatpush1.xpose.msra.mxu0 0.0
    %1277 = vmatprep.subr.mxu0 0.0
    %1278 = vmatpush1.xpose.msra.mxu0 0.0
    %1279 = vmatprep.subr.mxu0 0.0
    %1280 = vmatpush1.xpose.msra.mxu0 0.0
    %1281 = vmatprep.subr.mxu0 0.0
    %1282 = vmatpush1.xpose.msra.mxu0 0.0
    %1283 = vmatprep.subr.mxu0 0.0
    %1284 = vmatpush1.xpose.msra.mxu0 0.0
    %1285 = vmatprep.subr.mxu0 0.0
    %1286 = vmatpush1.xpose.msra.mxu0 0.0
    %1287 = vmatprep.subr.mxu0 0.0
    %1288 = vmatpush1.xpose.msra.mxu0 0.0
    %1289 = vmatprep.subr.mxu0 0.0
    %1290 = vmatpush1.xpose.msra.mxu0 0.0
    %1291 = vmatprep.mubr.f32.mxu0 0.0
    %1292 = vmatmul.mubr.f32.gmra.mrb[0].mxu0 %v1223
    %v1293 = vpop.f32.mrb[0].mxu0
    %v1294 = vadd.f32 0.0, %v1293
    %v1295 = vpop.f32.mrb[0].mxu0
    %1296 = vdwg.mxu0
    %1297 = vrot.lane.b32.xlu0 %v227, 104
    %v1298 = vpop.permute.xlu0 %1297
    %1299 = vrot.lane.b32.xlu0 %v227, 72
    %v1300 = vpop.permute.xlu0 %1299
    %v1301 = vsel %vm233, %v1298, 0
    %v1303 = vsel %vm233, %v1300, 0
    %1305 = vmatprep.subr.mxu0 0.0
    %1306 = vmatpush1.xpose.msra.mxu0 %v1303
    %1307 = vmatprep.subr.mxu0 0.0
    %1308 = vmatpush1.xpose.msra.mxu0 0.0
    %1309 = vmatprep.subr.mxu0 0.0
    %1310 = vmatpush1.xpose.msra.mxu0 0.0
    %1311 = vmatprep.subr.mxu0 0.0
    %1312 = vmatpush1.xpose.msra.mxu0 0.0
    %1313 = vmatprep.subr.mxu0 0.0
    %1314 = vmatpush1.xpose.msra.mxu0 0.0
    %1315 = vmatprep.subr.mxu0 0.0
    %1316 = vmatpush1.xpose.msra.mxu0 0.0
    %1317 = vmatprep.subr.mxu0 0.0
    %1318 = vmatpush1.xpose.msra.mxu0 0.0
    %1319 = vmatprep.subr.mxu0 0.0
    %1320 = vmatpush1.xpose.msra.mxu0 0.0
    %1321 = vmatprep.subr.mxu0 0.0
    %1322 = vmatpush1.xpose.msra.mxu0 0.0
    %1323 = vmatprep.subr.mxu0 0.0
    %1324 = vmatpush1.xpose.msra.mxu0 0.0
    %1325 = vmatprep.subr.mxu0 0.0
    %1326 = vmatpush1.xpose.msra.mxu0 0.0
    %1327 = vmatprep.subr.mxu0 0.0
    %1328 = vmatpush1.xpose.msra.mxu0 0.0
    %1329 = vmatprep.subr.mxu0 0.0
    %1330 = vmatpush1.xpose.msra.mxu0 0.0
    %1331 = vmatprep.subr.mxu0 0.0
    %1332 = vmatpush1.xpose.msra.mxu0 0.0
    %1333 = vmatprep.subr.mxu0 0.0
    %1334 = vmatpush1.xpose.msra.mxu0 0.0
    %1335 = vmatprep.subr.mxu0 0.0
    %1336 = vmatpush1.xpose.msra.mxu0 0.0
    %1337 = vmatprep.subr.mxu0 0.0
    %1338 = vmatpush1.xpose.msra.mxu0 0.0
    %1339 = vmatprep.subr.mxu0 0.0
    %1340 = vmatpush1.xpose.msra.mxu0 0.0
    %1341 = vmatprep.subr.mxu0 0.0
    %1342 = vmatpush1.xpose.msra.mxu0 0.0
    %1343 = vmatprep.subr.mxu0 0.0
    %1344 = vmatpush1.xpose.msra.mxu0 0.0
    %1345 = vmatprep.subr.mxu0 0.0
    %1346 = vmatpush1.xpose.msra.mxu0 0.0
    %1347 = vmatprep.subr.mxu0 0.0
    %1348 = vmatpush1.xpose.msra.mxu0 0.0
    %1349 = vmatprep.subr.mxu0 0.0
    %1350 = vmatpush1.xpose.msra.mxu0 0.0
    %1351 = vmatprep.subr.mxu0 0.0
    %1352 = vmatpush1.xpose.msra.mxu0 0.0
    %1353 = vmatprep.subr.mxu0 0.0
    %1354 = vmatpush1.xpose.msra.mxu0 0.0
    %1355 = vmatprep.subr.mxu0 0.0
    %1356 = vmatpush1.xpose.msra.mxu0 0.0
    %1357 = vmatprep.subr.mxu0 0.0
    %1358 = vmatpush1.xpose.msra.mxu0 0.0
    %1359 = vmatprep.subr.mxu0 0.0
    %1360 = vmatpush1.xpose.msra.mxu0 0.0
    %1361 = vmatprep.subr.mxu0 0.0
    %1362 = vmatpush1.xpose.msra.mxu0 0.0
    %1363 = vmatprep.subr.mxu0 0.0
    %1364 = vmatpush1.xpose.msra.mxu0 0.0
    %1365 = vmatprep.subr.mxu0 0.0
    %1366 = vmatpush1.xpose.msra.mxu0 0.0
    %1367 = vmatprep.subr.mxu0 0.0
    %1368 = vmatpush1.xpose.msra.mxu0 0.0
    %1369 = vmatprep.mubr.f32.mxu0 0.0
    %1370 = vmatmul.mubr.f32.gmra.mrb[0].mxu0 %v1301
    %v1371 = vpop.f32.mrb[0].mxu0
    %v1372 = vadd.f32 0.0, %v1371
    %v1373 = vpop.f32.mrb[0].mxu0
    %1374 = vdwg.mxu0
    %v1375 = vsel %vm233, %v1294, -inf
    %1376 = vmax.xlane.f32.xlu0 %v1375
    %v1377 = vpop.xlane.xlu0 %1376
    %v1378 = vsel %vm233, %v1372, -inf
    %1379 = vmax.xlane.f32.xlu0 %v1378
    %v1380 = vpop.xlane.xlu0 %1379
    %v1381 = vsub.f32 %v1294, %v1377
    %v1382 = vsub.f32 %v1372, %v1380
    %v1383 = vmul.f32 %v1381, 1.442695
    %v1384 = vpow.pop %v1383
    %v1385 = vmul.f32 %v1382, 1.442695
    %v1386 = vpow.pop %v1385
    %v1387 = vsel %vm233, %v1384, 0.0
    %1388 = vadd.xlane.f32.xlu0 %v1387
    %v1389 = vpop.xlane.xlu0 %1388
    %v1390 = vsel %vm233, %v1386, 0.0
    %1391 = vadd.xlane.f32.xlu0 %v1390
    %v1392 = vpop.xlane.xlu0 %1391
    %v1393 = vrcp.pop %v1389
    %v1394 = vmul.f32 %v1384, %v1393
    %v1395 = vrcp.pop %v1392
    %v1396 = vmul.f32 %v1386, %v1395
    %1397 = vrot.lane.b32.xlu0 %v222, 40
    %v1398 = vpop.permute.xlu0 %1397
    %v1401 = vsel %vm233, %v1394, 0
    %1403 = vmatprep.subr.mxu0 0.0
    %1404 = vmatpush1.msra.mxu0 %v1398
    %1405 = vmatprep.subr.mxu0 0.0
    %1406 = vmatpush1.msra.mxu0 0.0
    %1407 = vmatprep.subr.mxu0 0.0
    %1408 = vmatpush1.msra.mxu0 0.0
    %1409 = vmatprep.subr.mxu0 0.0
    %1410 = vmatpush1.msra.mxu0 0.0
    %1411 = vmatprep.subr.mxu0 0.0
    %1412 = vmatpush1.msra.mxu0 0.0
    %1413 = vmatprep.subr.mxu0 0.0
    %1414 = vmatpush1.msra.mxu0 0.0
    %1415 = vmatprep.subr.mxu0 0.0
    %1416 = vmatpush1.msra.mxu0 0.0
    %1417 = vmatprep.subr.mxu0 0.0
    %1418 = vmatpush1.msra.mxu0 0.0
    %1419 = vmatprep.subr.mxu0 0.0
    %1420 = vmatpush1.msra.mxu0 0.0
    %1421 = vmatprep.subr.mxu0 0.0
    %1422 = vmatpush1.msra.mxu0 0.0
    %1423 = vmatprep.subr.mxu0 0.0
    %1424 = vmatpush1.msra.mxu0 0.0
    %1425 = vmatprep.subr.mxu0 0.0
    %1426 = vmatpush1.msra.mxu0 0.0
    %1427 = vmatprep.subr.mxu0 0.0
    %1428 = vmatpush1.msra.mxu0 0.0
    %1429 = vmatprep.subr.mxu0 0.0
    %1430 = vmatpush1.msra.mxu0 0.0
    %1431 = vmatprep.subr.mxu0 0.0
    %1432 = vmatpush1.msra.mxu0 0.0
    %1433 = vmatprep.subr.mxu0 0.0
    %1434 = vmatpush1.msra.mxu0 0.0
    %1435 = vmatprep.subr.mxu0 0.0
    %1436 = vmatpush1.msra.mxu0 0.0
    %1437 = vmatprep.subr.mxu0 0.0
    %1438 = vmatpush1.msra.mxu0 0.0
    %1439 = vmatprep.subr.mxu0 0.0
    %1440 = vmatpush1.msra.mxu0 0.0
    %1441 = vmatprep.subr.mxu0 0.0
    %1442 = vmatpush1.msra.mxu0 0.0
    %1443 = vmatprep.subr.mxu0 0.0
    %1444 = vmatpush1.msra.mxu0 0.0
    %1445 = vmatprep.subr.mxu0 0.0
    %1446 = vmatpush1.msra.mxu0 0.0
    %1447 = vmatprep.subr.mxu0 0.0
    %1448 = vmatpush1.msra.mxu0 0.0
    %1449 = vmatprep.subr.mxu0 0.0
    %1450 = vmatpush1.msra.mxu0 0.0
    %1451 = vmatprep.subr.mxu0 0.0
    %1452 = vmatpush1.msra.mxu0 0.0
    %1453 = vmatprep.subr.mxu0 0.0
    %1454 = vmatpush1.msra.mxu0 0.0
    %1455 = vmatprep.subr.mxu0 0.0
    %1456 = vmatpush1.msra.mxu0 0.0
    %1457 = vmatprep.subr.mxu0 0.0
    %1458 = vmatpush1.msra.mxu0 0.0
    %1459 = vmatprep.subr.mxu0 0.0
    %1460 = vmatpush1.msra.mxu0 0.0
    %1461 = vmatprep.subr.mxu0 0.0
    %1462 = vmatpush1.msra.mxu0 0.0
    %1463 = vmatprep.subr.mxu0 0.0
    %1464 = vmatpush1.msra.mxu0 0.0
    %1465 = vmatprep.subr.mxu0 0.0
    %1466 = vmatpush1.msra.mxu0 0.0
    %1467 = vmatprep.mubr.f32.mxu0 0.0
    %1468 = vmatmul.mubr.f32.gmra.mrb[0].mxu0 %v1401
    %v1469 = vpop.f32.mrb[0].mxu0
    %v1470 = vadd.f32 0.0, %v1469
    %v1471 = vpop.f32.mrb[0].mxu0
    %1472 = vdwg.mxu0
    %1473 = vrot.lane.b32.xlu0 %v227, 40
    %v1474 = vpop.permute.xlu0 %1473
    %v1477 = vsel %vm233, %v1396, 0
    %1479 = vmatprep.subr.mxu0 0.0
    %1480 = vmatpush1.msra.mxu0 %v1474
    %1481 = vmatprep.subr.mxu0 0.0
    %1482 = vmatpush1.msra.mxu0 0.0
    %1483 = vmatprep.subr.mxu0 0.0
    %1484 = vmatpush1.msra.mxu0 0.0
    %1485 = vmatprep.subr.mxu0 0.0
    %1486 = vmatpush1.msra.mxu0 0.0
    %1487 = vmatprep.subr.mxu0 0.0
    %1488 = vmatpush1.msra.mxu0 0.0
    %1489 = vmatprep.subr.mxu0 0.0
    %1490 = vmatpush1.msra.mxu0 0.0
    %1491 = vmatprep.subr.mxu0 0.0
    %1492 = vmatpush1.msra.mxu0 0.0
    %1493 = vmatprep.subr.mxu0 0.0
    %1494 = vmatpush1.msra.mxu0 0.0
    %1495 = vmatprep.subr.mxu0 0.0
    %1496 = vmatpush1.msra.mxu0 0.0
    %1497 = vmatprep.subr.mxu0 0.0
    %1498 = vmatpush1.msra.mxu0 0.0
    %1499 = vmatprep.subr.mxu0 0.0
    %1500 = vmatpush1.msra.mxu0 0.0
    %1501 = vmatprep.subr.mxu0 0.0
    %1502 = vmatpush1.msra.mxu0 0.0
    %1503 = vmatprep.subr.mxu0 0.0
    %1504 = vmatpush1.msra.mxu0 0.0
    %1505 = vmatprep.subr.mxu0 0.0
    %1506 = vmatpush1.msra.mxu0 0.0
    %1507 = vmatprep.subr.mxu0 0.0
    %1508 = vmatpush1.msra.mxu0 0.0
    %1509 = vmatprep.subr.mxu0 0.0
    %1510 = vmatpush1.msra.mxu0 0.0
    %1511 = vmatprep.subr.mxu0 0.0
    %1512 = vmatpush1.msra.mxu0 0.0
    %1513 = vmatprep.subr.mxu0 0.0
    %1514 = vmatpush1.msra.mxu0 0.0
    %1515 = vmatprep.subr.mxu0 0.0
    %1516 = vmatpush1.msra.mxu0 0.0
    %1517 = vmatprep.subr.mxu0 0.0
    %1518 = vmatpush1.msra.mxu0 0.0
    %1519 = vmatprep.subr.mxu0 0.0
    %1520 = vmatpush1.msra.mxu0 0.0
    %1521 = vmatprep.subr.mxu0 0.0
    %1522 = vmatpush1.msra.mxu0 0.0
    %1523 = vmatprep.subr.mxu0 0.0
    %1524 = vmatpush1.msra.mxu0 0.0
    %1525 = vmatprep.subr.mxu0 0.0
    %1526 = vmatpush1.msra.mxu0 0.0
    %1527 = vmatprep.subr.mxu0 0.0
    %1528 = vmatpush1.msra.mxu0 0.0
    %1529 = vmatprep.subr.mxu0 0.0
    %1530 = vmatpush1.msra.mxu0 0.0
    %1531 = vmatprep.subr.mxu0 0.0
    %1532 = vmatpush1.msra.mxu0 0.0
    %1533 = vmatprep.subr.mxu0 0.0
    %1534 = vmatpush1.msra.mxu0 0.0
    %1535 = vmatprep.subr.mxu0 0.0
    %1536 = vmatpush1.msra.mxu0 0.0
    %1537 = vmatprep.subr.mxu0 0.0
    %1538 = vmatpush1.msra.mxu0 0.0
    %1539 = vmatprep.subr.mxu0 0.0
    %1540 = vmatpush1.msra.mxu0 0.0
    %1541 = vmatprep.subr.mxu0 0.0
    %1542 = vmatpush1.msra.mxu0 0.0
    %1543 = vmatprep.mubr.f32.mxu0 0.0
    %1544 = vmatmul.mubr.f32.gmra.mrb[0].mxu0 %v1477
    %v1545 = vpop.f32.mrb[0].mxu0
    %v1546 = vadd.f32 0.0, %v1545
    %v1547 = vpop.f32.mrb[0].mxu0
    %1548 = vdwg.mxu0
    %1551 = vrot.lane.b32.xlu0 %v810, 8
    %v1552 = vpop.permute.xlu0 %1551
    %1553 = vrot.lane.b32.xlu0 %v886, 8
    %v1554 = vpop.permute.xlu0 %1553
    %1559 = vrot.lane.b32.xlu0 %v1140, 16
    %v1560 = vpop.permute.xlu0 %1559
    %1561 = vrot.lane.b32.xlu0 %v1216, 16
    %v1562 = vpop.permute.xlu0 %1561
    %1567 = vrot.lane.b32.xlu0 %v1470, 24
    %v1568 = vpop.permute.xlu0 %1567
    %1569 = vrot.lane.b32.xlu0 %v1546, 24
    %v1570 = vpop.permute.xlu0 %1569
    %v1573 = vsel %vm233, %v480, %v1552
    %v1574 = vsel %vm233, %v556, %v1554
    %vm1575 = vcmask 130048
    %v1576 = vsel %vm1575, %v1573, %v1560
    %v1577 = vsel %vm1575, %v1574, %v1562
    %vm1578 = vcmask 195584
    %v1579 = vsel %vm1578, %v1576, %v1568
    %v1580 = vsel %vm1578, %v1577, %v1570
    %v1582 = vlaneseq
    %v1583 = vshrl.u32 %v1582, 7
    %v1584 = vsub.s32 0, %v1583
    %v1585 = vrot.slane %v68, %v1584
    %v1588 = vsel %vm99, %v1579, 0
    %v1591 = vsel %vm99, %v1580, 0
    %1593 = vmatprep.subr.mxu0 0.0
    %1594 = vmatpush1.msra.mxu0 %v64
    %1595 = vmatprep.subr.mxu0 0.0
    %1596 = vmatpush1.msra.mxu0 %v65
    %1597 = vmatprep.subr.mxu0 0.0
    %1598 = vmatpush1.msra.mxu0 %v66
    %1599 = vmatprep.subr.mxu0 0.0
    %1600 = vmatpush1.msra.mxu0 %v67
    %1601 = vmatprep.subr.mxu0 0.0
    %1602 = vmatpush1.msra.mxu0 0.0
    %1603 = vmatprep.subr.mxu0 0.0
    %1604 = vmatpush1.msra.mxu0 0.0
    %1605 = vmatprep.subr.mxu0 0.0
    %1606 = vmatpush1.msra.mxu0 0.0
    %1607 = vmatprep.subr.mxu0 0.0
    %1608 = vmatpush1.msra.mxu0 0.0
    %1609 = vmatprep.subr.mxu0 0.0
    %1610 = vmatpush1.msra.mxu0 0.0
    %1611 = vmatprep.subr.mxu0 0.0
    %1612 = vmatpush1.msra.mxu0 0.0
    %1613 = vmatprep.subr.mxu0 0.0
    %1614 = vmatpush1.msra.mxu0 0.0
    %1615 = vmatprep.subr.mxu0 0.0
    %1616 = vmatpush1.msra.mxu0 0.0
    %1617 = vmatprep.subr.mxu0 0.0
    %1618 = vmatpush1.msra.mxu0 0.0
    %1619 = vmatprep.subr.mxu0 0.0
    %1620 = vmatpush1.msra.mxu0 0.0
    %1621 = vmatprep.subr.mxu0 0.0
    %1622 = vmatpush1.msra.mxu0 0.0
    %1623 = vmatprep.subr.mxu0 0.0
    %1624 = vmatpush1.msra.mxu0 0.0
    %1625 = vmatprep.subr.mxu0 0.0
    %1626 = vmatpush1.msra.mxu0 0.0
    %1627 = vmatprep.subr.mxu0 0.0
    %1628 = vmatpush1.msra.mxu0 0.0
    %1629 = vmatprep.subr.mxu0 0.0
    %1630 = vmatpush1.msra.mxu0 0.0
    %1631 = vmatprep.subr.mxu0 0.0
    %1632 = vmatpush1.msra.mxu0 0.0
    %1633 = vmatprep.subr.mxu0 0.0
    %1634 = vmatpush1.msra.mxu0 0.0
    %1635 = vmatprep.subr.mxu0 0.0
    %1636 = vmatpush1.msra.mxu0 0.0
    %1637 = vmatprep.subr.mxu0 0.0
    %1638 = vmatpush1.msra.mxu0 0.0
    %1639 = vmatprep.subr.mxu0 0.0
    %1640 = vmatpush1.msra.mxu0 0.0
    %1641 = vmatprep.subr.mxu0 0.0
    %1642 = vmatpush1.msra.mxu0 0.0
    %1643 = vmatprep.subr.mxu0 0.0
    %1644 = vmatpush1.msra.mxu0 0.0
    %1645 = vmatprep.subr.mxu0 0.0
    %1646 = vmatpush1.msra.mxu0 0.0
    %1647 = vmatprep.subr.mxu0 0.0
    %1648 = vmatpush1.msra.mxu0 0.0
    %1649 = vmatprep.subr.mxu0 0.0
    %1650 = vmatpush1.msra.mxu0 0.0
    %1651 = vmatprep.subr.mxu0 0.0
    %1652 = vmatpush1.msra.mxu0 0.0
    %1653 = vmatprep.subr.mxu0 0.0
    %1654 = vmatpush1.msra.mxu0 0.0
    %1655 = vmatprep.subr.mxu0 0.0
    %1656 = vmatpush1.msra.mxu0 0.0
    %1657 = vmatprep.mubr.f32.mxu0 0.0
    %1658 = vmatmul.mubr.f32.gmra.mrb[0].mxu0 %v1588
    %v1659 = vpop.f32.mrb[0].mxu0
    %v1660 = vadd.f32 %v1585, %v1659
    %v1661 = vpop.f32.mrb[0].mxu0
    %1662 = vmatprep.mubr.f32.mxu0 0.0
    %1663 = vmatmul.mubr.f32.gmra.mrb[0].mxu0 %v1591
    %v1664 = vpop.f32.mrb[0].mxu0
    %v1665 = vadd.f32 %v1585, %v1664
    %v1666 = vpop.f32.mrb[0].mxu0
    %1667 = vdwg.mxu0
    %v1668 = vsel %vm99, %v1660, 0.0
    %1669 = vadd.xlane.f32.xlu0 %v1668
    %v1670 = vpop.xlane.xlu0 %1669
    %v1671 = vsel %vm99, %v1665, 0.0
    %1672 = vadd.xlane.f32.xlu0 %v1671
    %v1673 = vpop.xlane.xlu0 %1672
    %v1674 = vmul.f32 %v1670, %v106
    %v1675 = vmul.f32 %v1673, %v106
    %v1676 = vsub.f32 %v1660, %v1674
    %v1677 = vsub.f32 %v1665, %v1675
    %v1678 = vmul.f32 %v1676, %v1676
    %v1679 = vmul.f32 %v1677, %v1677
    %v1680 = vsel %vm99, %v1678, 0.0
    %1681 = vadd.xlane.f32.xlu0 %v1680
    %v1682 = vpop.xlane.xlu0 %1681
    %v1683 = vsel %vm99, %v1679, 0.0
    %1684 = vadd.xlane.f32.xlu0 %v1683
    %v1685 = vpop.xlane.xlu0 %1684
    %v1686 = vmul.f32 %v1682, %v106
    %v1687 = vmul.f32 %v1685, %v106
    %v1688 = vadd.f32 %v1686, 1e-05
    %v1689 = vadd.f32 %v1687, 1e-05
    %v1690 = vrsqrt.pop %v1688
    %v1691 = vrsqrt.pop %v1689
    %v1692 = vmul.f32 %v1676, %v1690
    %v1693 = vmul.f32 %v1677, %v1691
    %v1695 = vlaneseq
    %v1696 = vshrl.u32 %v1695, 7
    %v1697 = vsub.s32 0, %v1696
    %v1698 = vrot.slane %v71, %v1697
    %v1700 = vmul.f32 %v1692, %v1698
    %v1701 = vmul.f32 %v1693, %v1698
    %v1703 = vlaneseq
    %v1704 = vshrl.u32 %v1703, 7
    %v1705 = vsub.s32 0, %v1704
    %v1706 = vrot.slane %v72, %v1705
    %v1708 = vadd.f32 %v1700, %v1706
    %v1709 = vadd.f32 %v1701, %v1706
    %v1710 = vadd.f32 %v57, %v1708
    %v1711 = vadd.f32 %v58, %v1709
    %v1712 = vsel %vm99, %v1710, 0.0
    %1713 = vadd.xlane.f32.xlu0 %v1712
    %v1714 = vpop.xlane.xlu0 %1713
    %v1715 = vsel %vm99, %v1711, 0.0
    %1716 = vadd.xlane.f32.xlu0 %v1715
    %v1717 = vpop.xlane.xlu0 %1716
    %v1718 = vmul.f32 %v1714, %v106
    %v1719 = vmul.f32 %v1717, %v106
    %v1720 = vsub.f32 %v1710, %v1718
    %v1721 = vsub.f32 %v1711, %v1719
    %v1722 = vmul.f32 %v1720, %v1720
    %v1723 = vmul.f32 %v1721, %v1721
    %v1724 = vsel %vm99, %v1722, 0.0
    %1725 = vadd.xlane.f32.xlu0 %v1724
    %v1726 = vpop.xlane.xlu0 %1725
    %v1727 = vsel %vm99, %v1723, 0.0
    %1728 = vadd.xlane.f32.xlu0 %v1727
    %v1729 = vpop.xlane.xlu0 %1728
    %v1730 = vmul.f32 %v1726, %v106
    %v1731 = vmul.f32 %v1729, %v106
    %v1732 = vadd.f32 %v1730, 1e-05
    %v1733 = vadd.f32 %v1731, 1e-05
    %v1734 = vrsqrt.pop %v1732
    %v1735 = vrsqrt.pop %v1733
    %v1736 = vmul.f32 %v1720, %v1734
    %v1737 = vmul.f32 %v1721, %v1735
    %v1739 = vlaneseq
    %v1740 = vshrl.u32 %v1739, 7
    %v1741 = vsub.s32 0, %v1740
    %v1742 = vrot.slane %v73, %v1741
    %v1744 = vmul.f32 %v1736, %v1742
    %v1745 = vmul.f32 %v1737, %v1742
    %v1747 = vlaneseq
    %v1748 = vshrl.u32 %v1747, 7
    %v1749 = vsub.s32 0, %v1748
    %v1750 = vrot.slane %v74, %v1749
    %v1752 = vadd.f32 %v1744, %v1750
    %v1753 = vadd.f32 %v1745, %v1750
    %v1754 = vsel %vm99, %v1752, 0.0
    %1755 = vadd.xlane.f32.xlu0 %v1754
    %v1756 = vpop.xlane.xlu0 %1755
    %v1757 = vsel %vm99, %v1753, 0.0
    %1758 = vadd.xlane.f32.xlu0 %v1757
    %v1759 = vpop.xlane.xlu0 %1758
    %v1760 = vmul.f32 %v1756, %v106
    %v1761 = vmul.f32 %v1759, %v106
    %v1762 = vsub.f32 %v1752, %v1760
    %v1763 = vsub.f32 %v1753, %v1761
    %v1764 = vmul.f32 %v1762, %v1762
    %v1765 = vmul.f32 %v1763, %v1763
    %v1766 = vsel %vm99, %v1764, 0.0
    %1767 = vadd.xlane.f32.xlu0 %v1766
    %v1768 = vpop.xlane.xlu0 %1767
    %v1769 = vsel %vm99, %v1765, 0.0
    %1770 = vadd.xlane.f32.xlu0 %v1769
    %v1771 = vpop.xlane.xlu0 %1770
    %v1772 = vmul.f32 %v1768, %v106
    %v1773 = vmul.f32 %v1771, %v106
    %v1774 = vadd.f32 %v1772, 1e-05
    %v1775 = vadd.f32 %v1773, 1e-05
    %v1776 = vrsqrt.pop %v1774
    %v1777 = vrsqrt.pop %v1775
    %v1778 = vmul.f32 %v1762, %v1776
    %v1779 = vmul.f32 %v1763, %v1777
    %v1780 = vmul.f32 %v1778, %v1742
    %v1781 = vmul.f32 %v1779, %v1742
    %v1782 = vadd.f32 %v1780, %v1750
    %v1783 = vadd.f32 %v1781, %v1750
    %v1785 = vlaneseq
    %v1786 = vshrl.u32 %v1785, 7
    %v1787 = vsub.s32 0, %v1786
    %v1788 = vrot.slane %v81, %v1787
    %v1791 = vsel %vm99, %v1782, 0
    %v1794 = vsel %vm99, %v1783, 0
    %1796 = vmatprep.subr.mxu0 0.0
    %1797 = vmatpush1.msra.mxu0 %v77
    %1798 = vmatprep.subr.mxu0 0.0
    %1799 = vmatpush1.msra.mxu0 %v78
    %1800 = vmatprep.subr.mxu0 0.0
    %1801 = vmatpush1.msra.mxu0 %v79
    %1802 = vmatprep.subr.mxu0 0.0
    %1803 = vmatpush1.msra.mxu0 %v80
    %1804 = vmatprep.subr.mxu0 0.0
    %1805 = vmatpush1.msra.mxu0 0.0
    %1806 = vmatprep.subr.mxu0 0.0
    %1807 = vmatpush1.msra.mxu0 0.0
    %1808 = vmatprep.subr.mxu0 0.0
    %1809 = vmatpush1.msra.mxu0 0.0
    %1810 = vmatprep.subr.mxu0 0.0
    %1811 = vmatpush1.msra.mxu0 0.0
    %1812 = vmatprep.subr.mxu0 0.0
    %1813 = vmatpush1.msra.mxu0 0.0
    %1814 = vmatprep.subr.mxu0 0.0
    %1815 = vmatpush1.msra.mxu0 0.0
    %1816 = vmatprep.subr.mxu0 0.0
    %1817 = vmatpush1.msra.mxu0 0.0
    %1818 = vmatprep.subr.mxu0 0.0
    %1819 = vmatpush1.msra.mxu0 0.0
    %1820 = vmatprep.subr.mxu0 0.0
    %1821 = vmatpush1.msra.mxu0 0.0
    %1822 = vmatprep.subr.mxu0 0.0
    %1823 = vmatpush1.msra.mxu0 0.0
    %1824 = vmatprep.subr.mxu0 0.0
    %1825 = vmatpush1.msra.mxu0 0.0
    %1826 = vmatprep.subr.mxu0 0.0
    %1827 = vmatpush1.msra.mxu0 0.0
    %1828 = vmatprep.subr.mxu0 0.0
    %1829 = vmatpush1.msra.mxu0 0.0
    %1830 = vmatprep.subr.mxu0 0.0
    %1831 = vmatpush1.msra.mxu0 0.0
    %1832 = vmatprep.subr.mxu0 0.0
    %1833 = vmatpush1.msra.mxu0 0.0
    %1834 = vmatprep.subr.mxu0 0.0
    %1835 = vmatpush1.msra.mxu0 0.0
    %1836 = vmatprep.subr.mxu0 0.0
    %1837 = vmatpush1.msra.mxu0 0.0
    %1838 = vmatprep.subr.mxu0 0.0
    %1839 = vmatpush1.msra.mxu0 0.0
    %1840 = vmatprep.subr.mxu0 0.0
    %1841 = vmatpush1.msra.mxu0 0.0
    %1842 = vmatprep.subr.mxu0 0.0
    %1843 = vmatpush1.msra.mxu0 0.0
    %1844 = vmatprep.subr.mxu0 0.0
    %1845 = vmatpush1.msra.mxu0 0.0
    %1846 = vmatprep.subr.mxu0 0.0
    %1847 = vmatpush1.msra.mxu0 0.0
    %1848 = vmatprep.subr.mxu0 0.0
    %1849 = vmatpush1.msra.mxu0 0.0
    %1850 = vmatprep.subr.mxu0 0.0
    %1851 = vmatpush1.msra.mxu0 0.0
    %1852 = vmatprep.subr.mxu0 0.0
    %1853 = vmatpush1.msra.mxu0 0.0
    %1854 = vmatprep.subr.mxu0 0.0
    %1855 = vmatpush1.msra.mxu0 0.0
    %1856 = vmatprep.subr.mxu0 0.0
    %1857 = vmatpush1.msra.mxu0 0.0
    %1858 = vmatprep.subr.mxu0 0.0
    %1859 = vmatpush1.msra.mxu0 0.0
    %1860 = vmatprep.mubr.f32.mxu0 0.0
    %1861 = vmatmul.mubr.f32.gmra.mrb[0].mxu0 %v1791
    %v1862 = vpop.f32.mrb[0].mxu0
    %v1863 = vadd.f32 %v1788, %v1862
    %v1864 = vpop.f32.mrb[0].mxu0
    %1865 = vmatprep.mubr.f32.mxu0 0.0
    %1866 = vmatmul.mubr.f32.gmra.mrb[0].mxu0 %v1794
    %v1867 = vpop.f32.mrb[0].mxu0
    %v1868 = vadd.f32 %v1788, %v1867
    %v1869 = vpop.f32.mrb[0].mxu0
    %1870 = vdwg.mxu0
    %v1871 = vmul.f32 %v1863, 0.5
    %v1872 = vmul.f32 %v1868, 0.5
    %v1873 = vmul.f32 %v1863, 0.70710677
    %v1874 = vmul.f32 %v1868, 0.70710677
    %v1875 = vand.u32 2147483647, %v1873
    %v1876 = vand.u32 2147483647, %v1874
    %v1877 = vmul.f32 %v1875, 0.3275911
    %v1878 = vmul.f32 %v1876, 0.3275911
    %v1879 = vadd.f32 %v1877, 1.0
    %v1880 = vadd.f32 %v1878, 1.0
    %v1881 = vrcp.pop %v1879
    %v1882 = vmul.f32 1.0, %v1881
    %v1883 = vrcp.pop %v1880
    %v1884 = vmul.f32 1.0, %v1883
    %v1885 = vmul.f32 %v1882, 1.0614054
    %v1886 = vmul.f32 %v1884, 1.0614054
    %v1887 = vadd.f32 %v1885, -1.4531521
    %v1888 = vadd.f32 %v1886, -1.4531521
    %v1889 = vmul.f32 %v1887, %v1882
    %v1890 = vmul.f32 %v1888, %v1884
    %v1891 = vadd.f32 %v1889, 1.4214138
    %v1892 = vadd.f32 %v1890, 1.4214138
    %v1893 = vmul.f32 %v1891, %v1882
    %v1894 = vmul.f32 %v1892, %v1884
    %v1895 = vadd.f32 %v1893, -0.28449672
    %v1896 = vadd.f32 %v1894, -0.28449672
    %v1897 = vmul.f32 %v1895, %v1882
    %v1898 = vmul.f32 %v1896, %v1884
    %v1899 = vadd.f32 %v1897, 0.2548296
    %v1900 = vadd.f32 %v1898, 0.2548296
    %v1901 = vmul.f32 %v1899, %v1882
    %v1902 = vmul.f32 %v1900, %v1884
    %v1903 = vsub.f32 0.0, %v1875
    %v1904 = vsub.f32 0.0, %v1876
    %v1905 = vmul.f32 %v1903, %v1875
    %v1906 = vmul.f32 %v1904, %v1876
    %v1907 = vmul.f32 %v1905, 1.442695
    %v1908 = vpow.pop %v1907
    %v1909 = vmul.f32 %v1906, 1.442695
    %v1910 = vpow.pop %v1909
    %v1911 = vmul.f32 %v1901, %v1908
    %v1912 = vmul.f32 %v1902, %v1910
    %v1913 = vsub.f32 1.0, %v1911
    %v1914 = vsub.f32 1.0, %v1912
    %vm1915 = vcmp.ge.f32.partialorder %v1873, 0.0
    %vm1916 = vcmp.ge.f32.partialorder %v1874, 0.0
    %v1917 = vsub.f32 0.0, %v1913
    %v1918 = vsub.f32 0.0, %v1914
    %v1919 = vsel %vm1915, %v1913, %v1917
    %v1920 = vsel %vm1916, %v1914, %v1918
    %v1921 = vadd.f32 %v1919, 1.0
    %v1922 = vadd.f32 %v1920, 1.0
    %v1923 = vmul.f32 %v1871, %v1921
    %v1924 = vmul.f32 %v1872, %v1922
    %1925 = vadd.xlane.f32.xlu0 %v1923
    %v1926 = vpop.xlane.xlu0 %1925
    %1927 = vadd.xlane.f32.xlu0 %v1924
    %v1928 = vpop.xlane.xlu0 %1927
    %v1929 = vrcp.pop 128.0
    %v1930 = vmul.f32 %v1926, %v1929
    %v1931 = vmul.f32 %v1928, %v1929
    %v1932 = vsub.f32 %v1923, %v1930
    %v1933 = vsub.f32 %v1924, %v1931
    %v1934 = vmul.f32 %v1932, %v1932
    %v1935 = vmul.f32 %v1933, %v1933
    %1936 = vadd.xlane.f32.xlu0 %v1934
    %v1937 = vpop.xlane.xlu0 %1936
    %1938 = vadd.xlane.f32.xlu0 %v1935
    %v1939 = vpop.xlane.xlu0 %1938
    %v1940 = vmul.f32 %v1937, %v1929
    %v1941 = vmul.f32 %v1939, %v1929
    %v1942 = vadd.f32 %v1940, 1e-05
    %v1943 = vadd.f32 %v1941, 1e-05
    %v1944 = vrsqrt.pop %v1942
    %v1945 = vrsqrt.pop %v1943
    %v1946 = vmul.f32 %v1932, %v1944
    %v1947 = vmul.f32 %v1933, %v1945
    %v1949 = vlaneseq
    %v1950 = vshrl.u32 %v1949, 7
    %v1951 = vsub.s32 0, %v1950
    %v1952 = vrot.slane %v75, %v1951
    %v1954 = vmul.f32 %v1946, %v1952
    %v1955 = vmul.f32 %v1947, %v1952
    %v1957 = vlaneseq
    %v1958 = vshrl.u32 %v1957, 7
    %v1959 = vsub.s32 0, %v1958
    %v1960 = vrot.slane %v76, %v1959
    %v1962 = vadd.f32 %v1954, %v1960
    %v1963 = vadd.f32 %v1955, %v1960
    %1964 = vmatprep.subr.mxu0 0.0
    %1965 = vmatpush1.msra.mxu0 %v82
    %1966 = vmatprep.subr.mxu0 0.0
    %1967 = vmatpush1.msra.mxu0 %v83
    %1968 = vmatprep.subr.mxu0 0.0
    %1969 = vmatpush1.msra.mxu0 %v84
    %1970 = vmatprep.subr.mxu0 0.0
    %1971 = vmatpush1.msra.mxu0 %v85
    %1972 = vmatprep.subr.mxu0 0.0
    %1973 = vmatpush1.msra.mxu0 %v86
    %1974 = vmatprep.subr.mxu0 0.0
    %1975 = vmatpush1.msra.mxu0 %v87
    %1976 = vmatprep.subr.mxu0 0.0
    %1977 = vmatpush1.msra.mxu0 %v88
    %1978 = vmatprep.subr.mxu0 0.0
    %1979 = vmatpush1.msra.mxu0 %v89
    %1980 = vmatprep.subr.mxu0 0.0
    %1981 = vmatpush1.msra.mxu0 %v90
    %1982 = vmatprep.subr.mxu0 0.0
    %1983 = vmatpush1.msra.mxu0 %v91
    %1984 = vmatprep.subr.mxu0 0.0
    %1985 = vmatpush1.msra.mxu0 %v92
    %1986 = vmatprep.subr.mxu0 0.0
    %1987 = vmatpush1.msra.mxu0 %v93
    %1988 = vmatprep.subr.mxu0 0.0
    %1989 = vmatpush1.msra.mxu0 %v94
    %1990 = vmatprep.subr.mxu0 0.0
    %1991 = vmatpush1.msra.mxu0 %v95
    %1992 = vmatprep.subr.mxu0 0.0
    %1993 = vmatpush1.msra.mxu0 %v96
    %1994 = vmatprep.subr.mxu0 0.0
    %1995 = vmatpush1.msra.mxu0 %v97
    %1996 = vmatprep.subr.mxu0 0.0
    %1997 = vmatpush1.msra.mxu0 0.0
    %1998 = vmatprep.subr.mxu0 0.0
    %1999 = vmatpush1.msra.mxu0 0.0
    %2000 = vmatprep.subr.mxu0 0.0
    %2001 = vmatpush1.msra.mxu0 0.0
    %2002 = vmatprep.subr.mxu0 0.0
    %2003 = vmatpush1.msra.mxu0 0.0
    %2004 = vmatprep.subr.mxu0 0.0
    %2005 = vmatpush1.msra.mxu0 0.0
    %2006 = vmatprep.subr.mxu0 0.0
    %2007 = vmatpush1.msra.mxu0 0.0
    %2008 = vmatprep.subr.mxu0 0.0
    %2009 = vmatpush1.msra.mxu0 0.0
    %2010 = vmatprep.subr.mxu0 0.0
    %2011 = vmatpush1.msra.mxu0 0.0
    %2012 = vmatprep.subr.mxu0 0.0
    %2013 = vmatpush1.msra.mxu0 0.0
    %2014 = vmatprep.subr.mxu0 0.0
    %2015 = vmatpush1.msra.mxu0 0.0
    %2016 = vmatprep.subr.mxu0 0.0
    %2017 = vmatpush1.msra.mxu0 0.0
    %2018 = vmatprep.subr.mxu0 0.0
    %2019 = vmatpush1.msra.mxu0 0.0
    %2020 = vmatprep.subr.mxu0 0.0
    %2021 = vmatpush1.msra.mxu0 0.0
    %2022 = vmatprep.subr.mxu0 0.0
    %2023 = vmatpush1.msra.mxu0 0.0
    %2024 = vmatprep.subr.mxu0 0.0
    %2025 = vmatpush1.msra.mxu0 0.0
    %2026 = vmatprep.subr.mxu0 0.0
    %2027 = vmatpush1.msra.mxu0 0.0
    %2028 = vmatprep.mubr.f32.mxu0 0.0
    %2029 = vmatmul.mubr.f32.gmra.mrb[0].mxu0 %v1962
    %v2030 = vpop.f32.mrb[0].mxu0
    %v2031 = vadd.f32 0.0, %v2030
    %v2032 = vpop.f32.mrb[0].mxu0
    %2033 = vmatprep.mubr.f32.mxu0 0.0
    %2034 = vmatmul.mubr.f32.gmra.mrb[0].mxu0 %v1963
    %v2035 = vpop.f32.mrb[0].mxu0
    %v2036 = vadd.f32 0.0, %v2035
    %v2037 = vpop.f32.mrb[0].mxu0
    %2038 = vdwg.mxu0
    %v2039 = vadd.f32 %v1710, %v2031
    %v2040 = vadd.f32 %v1711, %v2036
    %v2042 = vlaneseq
    %v2043 = vshrl.u32 %v2042, 7
    %v2044 = vsub.s32 0, %v2043
    %v2045 = vrot.slane %v98, %v2044
    %v2047 = vadd.f32 %v2039, %v2045
    %v2048 = vadd.f32 %v2040, %v2045
    %v2050 = vrot.slane %v2047, 4
    %2051 = vrot.lane.b32.xlu0 %v2050, 32
    %v2052 = vpop.permute.xlu0 %2051
    %2055 = vrot.lane.b32.xlu0 %v2048, 64
    %v2056 = vpop.permute.xlu0 %2055
    %v2058 = vrot.slane %v2048, 4
    %2059 = vrot.lane.b32.xlu0 %v2058, 96
    %v2060 = vpop.permute.xlu0 %2059
    %v2062 = vsel %vm99, %v2047, %v2052
    %vm2063 = vcmask 523264
    %v2064 = vsel %vm2063, %v2062, %v2056
    %vm2065 = vcmask 785408
    %v2066 = vsel %vm2065, %v2064, %v2060
    %2067 = vst [vmem:[#allocation2] sm:$0xf] %v2066
    // Predicated region
    $region70: #{tpu_custom_call.1} parent=1 // pred_check
      _
    $region71: #{tpu_custom_call.1} parent=1 // pred_check_branch
      %2069 = sbr.rel (0) target = $region73
    $region72: #{tpu_custom_call.1} parent=1 // pred_region
      %s2071 = ssub.s32 64, 64
      %2072 = vsyncadd [#allocation3], %s2071
      %s2074 = sshll.u32 [#allocation2], 4
      %s2075 = int_to_ptr.vmem [resolvable:$true] %s2074
      %2077 = dma.vmem_to_hbm [thread:$0]  %s2075, 64, %s17, [#allocation3]
    $region73: #{tpu_custom_call.1} parent=1 // pred_fallthru
      _
    // Predicated region
    $region74: #{tpu_custom_call.1} parent=1 // pred_check
      _
    $region75: #{tpu_custom_call.1} parent=1 // pred_check_branch
      %2079 = sbr.rel (0) target = $region77
    $region76: #{tpu_custom_call.1} parent=1 // pred_region
      %2080 = dma.done [#allocation3], 64
    $region77: #{tpu_custom_call.1} parent=1 // pred_fallthru
      _
    %2081 = vsyncpa [#allocation3], 1

</llo_original>
